<compile_context>
chip_gen: v7x
topology: tpu7x:2x2x1
jax: 0.10.0
libtpu: 0.0.40
codegen_flags: <defaults>
</compile_context>

<pallas_src>
import numpy as np
import jax
import jax.numpy as jnp
from jax import lax
from jax.experimental import pallas as pl
from jax.experimental.pallas import tpu as pltpu

LANE = 128  # TPU lane width; hidden/class feature dims are zero-padded to this


def _pick_chunk(N):
    """Candidate-chunk size: multiple of 8 (sublane aligned), divides N."""
    assert N % 8 == 0, "num_nodes must be a multiple of 8"
    if N % 16 == 0 and N > 64:
        return 16
    return 8


def _make_fused_kernel(N, n_class, c_chunk, big):
    num_chunks = N // c_chunk

    def kernel(adj_ref, x_ref, w1_ref, b1_ref, w2_ref, b2_ref,
               out_ref, adj_s, h_ref, med_ref, le_ref):
        # ---- effective adjacency: force diag to 1 (remove + add self loops) --
        r_id = lax.broadcasted_iota(jnp.int32, (N, N), 0)
        c_id = lax.broadcasted_iota(jnp.int32, (N, N), 1)
        adj_s[...] = jnp.where(r_id == c_id, jnp.asarray(1.0, jnp.bfloat16),
                               adj_ref[...])

        deg = jnp.sum(adj_s[...].astype(jnp.float32), axis=1, keepdims=True)
        # lower-median rank threshold, shifted by the neighbor-validity constant
        thr_big = (jnp.floor((deg - 1.0) * 0.5) + 1.0) + (big - 1.0)   # (N, 1)

        node_id = lax.broadcasted_iota(jnp.int32, (N, LANE), 0)
        big_bf = jnp.asarray(big, jnp.bfloat16)

        def median_aggregate():
            """Median aggregation of h_ref over the graph; result in med_ref."""
            med_ref[...] = jnp.full((N, LANE), jnp.inf, jnp.float32)

            def chunk_body(ci, carry):
                c0 = pl.multiple_of(ci * c_chunk, c_chunk)
                h_full = h_ref[...]                                  # (N, LANE)
                h_chunk = h_ref[pl.ds(c0, c_chunk), :]               # (C, LANE)

                # LE slab: LE[j, c*128+f] = (h[j,f] <= h[c0+c,f]); the
                # candidate's own row carries BIG, folding the adjacency
                # validity test into the count matmul.
                for c in range(c_chunk):
                    le = (h_full <= h_chunk[c:c + 1, :]).astype(jnp.bfloat16)
                    le_ref[:, c * LANE:(c + 1) * LANE] = jnp.where(
                        node_id == (c0 + c), big_bf, le)

                # One lane-dense MXU matmul per chunk; result consumed directly.
                counts = jnp.dot(adj_s[...], le_ref[...],
                                 preferred_element_type=jnp.float32)  # (N, C*128)

                # Selection: med[i,f] = min over valid candidates of h[cand,f].
                m = med_ref[...]
                for c in range(c_chunk):
                    valid = counts[:, c * LANE:(c + 1) * LANE] >= thr_big
                    m = jnp.minimum(
                        m, jnp.where(valid, h_chunk[c:c + 1, :], jnp.inf))
                med_ref[...] = m
                return carry

            lax.fori_loop(0, num_chunks, chunk_body, 0)

        # --------------- layer 1: MedianConv + bias + ReLU -------------------
        h_ref[...] = jnp.dot(x_ref[...], w1_ref[...],
                             preferred_element_type=jnp.float32)      # (N, LANE)
        median_aggregate()
        z1 = jnp.maximum(med_ref[...] + b1_ref[...], 0.0)

        # --------------- layer 2: MedianConv + bias + log_softmax ------------
        h_ref[...] = jnp.dot(z1, w2_ref[...],
                             preferred_element_type=jnp.float32)      # (N, LANE)
        median_aggregate()
        logits = med_ref[...] + b2_ref[...]

        # log_softmax over the real (first n_class) lanes only.
        lane_id = lax.broadcasted_iota(jnp.int32, (N, LANE), 1)
        real = lane_id < n_class
        masked = jnp.where(real, logits, -jnp.inf)
        mx = jnp.max(masked, axis=1, keepdims=True)
        z = masked - mx
        lse = jnp.log(jnp.sum(jnp.exp(z), axis=1, keepdims=True))
        out_ref[...] = jnp.where(real, z - lse, 0.0)                  # lane-dense

    return kernel


# ----------------------- one-time (hoisted) preparation ----------------------
def prepare_params(w1, b1, w2, b2):
    """Pad weights/biases to 128 lanes ONCE at model init (not per forward)."""
    f_in, n_hid = w1.shape
    n_class = w2.shape[1]
    assert n_hid <= LANE and n_class <= LANE
    w1p = jnp.zeros((f_in, LANE), jnp.float32).at[:, :n_hid].set(
        jnp.asarray(w1, jnp.float32))
    b1p = jnp.zeros((1, LANE), jnp.float32).at[:, :n_hid].set(
        jnp.reshape(jnp.asarray(b1, jnp.float32), (1, n_hid)))
    w2p = jnp.zeros((LANE, LANE), jnp.float32).at[:n_hid, :n_class].set(
        jnp.asarray(w2, jnp.float32))
    b2p = jnp.zeros((1, LANE), jnp.float32).at[:, :n_class].set(
        jnp.reshape(jnp.asarray(b2, jnp.float32), (1, n_class)))
    return w1p, b1p, w2p, b2p


def prepare_adj(adj):
    """Cast dense {0,1} adjacency to bf16 ONCE per graph (exact for binary).
    Self-loops are forced inside the kernel (diag := 1)."""
    return jnp.asarray(adj, jnp.bfloat16)


def make_median_gcn_forward(N, nfeat, nhid, nclass):
    """Build the fused forward for fixed shapes; the pallas_call and jit are
    constructed once and reused per call."""
    c_chunk = _pick_chunk(N)
    # power-of-two validity constant (exact in bf16), > N so non-neighbors can
    # never pass the shifted rank test.
    big = float(max(512, 2 ** int(np.ceil(np.log2(N + 2)))))
    kernel = _make_fused_kernel(N, nclass, c_chunk, big)

    fused = pl.pallas_call(
        kernel,
        out_shape=jax.ShapeDtypeStruct((N, LANE), jnp.float32),
        grid_spec=pltpu.PrefetchScalarGridSpec(
            num_scalar_prefetch=0,
            grid=(1,),                                   # single invocation
            in_specs=[
                pl.BlockSpec((N, N), lambda i: (0, 0)),          # adj (bf16)
                pl.BlockSpec((N, nfeat), lambda i: (0, 0)),      # x
                pl.BlockSpec((nfeat, LANE), lambda i: (0, 0)),   # W1 (padded)
                pl.BlockSpec((1, LANE), lambda i: (0, 0)),       # b1 (padded)
                pl.BlockSpec((LANE, LANE), lambda i: (0, 0)),    # W2 (padded)
                pl.BlockSpec((1, LANE), lambda i: (0, 0)),       # b2 (padded)
            ],
            out_specs=pl.BlockSpec((N, LANE), lambda i: (0, 0)),
            scratch_shapes=[
                pltpu.VMEM((N, N), jnp.bfloat16),                # adj w/ self loops
                pltpu.VMEM((N, LANE), jnp.float32),              # h (per layer)
                pltpu.VMEM((N, LANE), jnp.float32),              # median accumulator
                pltpu.VMEM((N, c_chunk * LANE), jnp.bfloat16),   # LE candidate chunk
            ],
        ),
        compiler_params=pltpu.CompilerParams(
            dimension_semantics=("arbitrary",),
        ),
    )

    @jax.jit
    def forward(adj_bf16, x, w1p, b1p, w2p, b2p):
        out_padded = fused(adj_bf16, x.astype(jnp.float32), w1p, b1p, w2p, b2p)
        return out_padded[:, :nclass]

    return forward


# ----------------------------- numpy reference ------------------------------
def _median_conv_ref(x, adj, w, b):
    h = np.asarray(x, np.float64) @ np.asarray(w, np.float64)
    N, F_out = h.shape[0], w.shape[1]
    A = np.array(adj, np.float64)
    np.fill_diagonal(A, 1.0)                 # remove_self_loops + add_self_loops
    out = np.zeros((N, F_out), np.float64)
    for i in range(N):
        nbr = np.where(A[i] > 0)[0]
        vals = np.sort(h[nbr], axis=0)
        k = (len(nbr) - 1) // 2              # torch.median -> lower median
        out[i] = vals[k]
    return out + np.asarray(b, np.float64).reshape(1, -1)


def _log_softmax_ref(z):
    z = z - z.max(axis=1, keepdims=True)
    return z - np.log(np.exp(z).sum(axis=1, keepdims=True))


def _median_gcn_ref(x, adj, w1, b1, w2, b2):
    h = np.maximum(_median_conv_ref(x, adj, w1, b1), 0.0)
    out = _median_conv_ref(h, adj, w2, b2)
    return _log_softmax_ref(out)


# --------------------------------- driver -----------------------------------
if __name__ == "__main__":
    N = 16        # number of graph nodes
    nfeat = 16
    nhid = 32
    nclass = 8

    key = jax.random.PRNGKey(0)
    k_adj, k_x, k_w1, k_b1, k_w2, k_b2 = jax.random.split(key, 6)

    # Random undirected graph WITHOUT self-loops (the kernel forces diag := 1,
    # matching the module's remove_self_loops + add_self_loops).
    A = (jax.random.uniform(k_adj, (N, N)) < 0.25).astype(jnp.float32)
    A = jnp.maximum(A, A.T)
    A = A * (1.0 - jnp.eye(N, dtype=jnp.float32))

    x = jax.random.normal(k_x, (N, nfeat), dtype=jnp.float32)

    # Deterministic parameter init (Linear weights uniform(-1/sqrt(fan_in), ...)).
    s1 = 1.0 / np.sqrt(nfeat)
    s2 = 1.0 / np.sqrt(nhid)
    w1 = jax.random.uniform(k_w1, (nfeat, nhid), jnp.float32, -s1, s1)
    b1 = jax.random.uniform(k_b1, (1, nhid), jnp.float32, -0.1, 0.1)
    w2 = jax.random.uniform(k_w2, (nhid, nclass), jnp.float32, -s2, s2)
    b2 = jax.random.uniform(k_b2, (1, nclass), jnp.float32, -0.1, 0.1)

    # Hoisted, one-time preparation (not in the per-call hot path).
    params = prepare_params(w1, b1, w2, b2)
    adj_bf16 = prepare_adj(A)
    forward = make_median_gcn_forward(N, nfeat, nhid, nclass)

    out = forward(adj_bf16, x, *params)
    out = jax.block_until_ready(out)

    ref = _median_gcn_ref(np.asarray(x), np.asarray(A), np.asarray(w1),
                          np.asarray(b1), np.asarray(w2), np.asarray(b2))
    np.testing.assert_allclose(np.asarray(out), ref, rtol=1e-4, atol=1e-4)

    print("KERNEL_OK")
</pallas_src>

<mosaic_0001>
module attributes {stable_mosaic.version = 11 : i64} {
  func.func @kernel(%arg0: i32, %arg1: memref<16x16xbf16, #tpu.memory_space<vmem>>, %arg2: memref<16x16xf32, #tpu.memory_space<vmem>>, %arg3: memref<16x128xf32, #tpu.memory_space<vmem>>, %arg4: memref<1x128xf32, #tpu.memory_space<vmem>>, %arg5: memref<128x128xf32, #tpu.memory_space<vmem>>, %arg6: memref<1x128xf32, #tpu.memory_space<vmem>>, %arg7: memref<16x128xf32, #tpu.memory_space<vmem>>, %arg8: memref<16x16xbf16, #tpu.memory_space<vmem>>, %arg9: memref<16x128xf32, #tpu.memory_space<vmem>>, %arg10: memref<16x128xf32, #tpu.memory_space<vmem>>, %arg11: memref<16x1024xbf16, #tpu.memory_space<vmem>>) attributes {dimension_semantics = [#tpu.dimension_semantics<arbitrary>], iteration_bounds = array<i64: 1>, scalar_prefetch = 0 : i64, scratch_operands = 4 : i64, tpu.core_type = #tpu.core_type<tc>, window_params = [{pipeline_mode = #tpu.pipeline_mode<synchronous>, transform_indices = @transform_0, window_bounds = array<i64: 16, 16>}, {pipeline_mode = #tpu.pipeline_mode<synchronous>, transform_indices = @transform_1, window_bounds = array<i64: 16, 16>}, {pipeline_mode = #tpu.pipeline_mode<synchronous>, transform_indices = @transform_2, window_bounds = array<i64: 16, 128>}, {pipeline_mode = #tpu.pipeline_mode<synchronous>, transform_indices = @transform_3, window_bounds = array<i64: 1, 128>}, {pipeline_mode = #tpu.pipeline_mode<synchronous>, transform_indices = @transform_4, window_bounds = array<i64: 128, 128>}, {pipeline_mode = #tpu.pipeline_mode<synchronous>, transform_indices = @transform_5, window_bounds = array<i64: 1, 128>}, {pipeline_mode = #tpu.pipeline_mode<synchronous>, transform_indices = @transform_6, window_bounds = array<i64: 16, 128>}]} {
    %0 = tpu.iota {dimensions = array<i32: 0>} : vector<16x16xi32>
    %1 = tpu.iota {dimensions = array<i32: 1>} : vector<16x16xi32>
    %2 = arith.cmpi eq, %0, %1 : vector<16x16xi32>
    %c0 = arith.constant 0 : index
    %c0_0 = arith.constant 0 : index
    %3 = vector.load %arg1[%c0, %c0_0] : memref<16x16xbf16, #tpu.memory_space<vmem>>, vector<16x16xbf16>
    %cst = arith.constant 1.000000e+00 : bf16
    %4 = vector.broadcast %cst : bf16 to vector<16x16xbf16>
    %5 = arith.select %2, %4, %3 : vector<16x16xi1>, vector<16x16xbf16>
    %c0_1 = arith.constant 0 : index
    %c0_2 = arith.constant 0 : index
    %6 = vector.load %arg8[%c0_1, %c0_2] : memref<16x16xbf16, #tpu.memory_space<vmem>>, vector<16x16xbf16>
    tpu.vector_store %arg8[%c0_1, %c0_2], %5 {strides = array<i32>} : memref<16x16xbf16, #tpu.memory_space<vmem>>, vector<16x16xbf16>,
    %c0_3 = arith.constant 0 : index
    %c0_4 = arith.constant 0 : index
    %7 = vector.load %arg8[%c0_3, %c0_4] : memref<16x16xbf16, #tpu.memory_space<vmem>>, vector<16x16xbf16>
    %8 = arith.extf %7 : vector<16x16xbf16> to vector<16x16xf32>
    %cst_5 = arith.constant dense<0.000000e+00> : vector<16xf32>
    %9 = vector.multi_reduction <add>, %8, %cst_5 [1] : vector<16x16xf32> to vector<16xf32>
    %10 = vector.shape_cast %9 : vector<16xf32> to vector<16x1xf32>
    %cst_6 = arith.constant 1.000000e+00 : f32
    %11 = vector.broadcast %cst_6 : f32 to vector<16x1xf32>
    %12 = arith.subf %10, %11 : vector<16x1xf32>
    %cst_7 = arith.constant 5.000000e-01 : f32
    %13 = vector.broadcast %cst_7 : f32 to vector<16x1xf32>
    %14 = arith.mulf %12, %13 : vector<16x1xf32>
    %15 = math.floor %14 : vector<16x1xf32>
    %cst_8 = arith.constant 1.000000e+00 : f32
    %16 = vector.broadcast %cst_8 : f32 to vector<16x1xf32>
    %17 = arith.addf %15, %16 : vector<16x1xf32>
    %cst_9 = arith.constant 5.110000e+02 : f32
    %18 = vector.broadcast %cst_9 : f32 to vector<16x1xf32>
    %19 = arith.addf %17, %18 : vector<16x1xf32>
    %20 = tpu.iota {dimensions = array<i32: 0>} : vector<16x128xi32>
    %c0_10 = arith.constant 0 : index
    %c0_11 = arith.constant 0 : index
    %21 = vector.load %arg2[%c0_10, %c0_11] : memref<16x16xf32, #tpu.memory_space<vmem>>, vector<16x16xf32>
    %c0_12 = arith.constant 0 : index
    %c0_13 = arith.constant 0 : index
    %22 = vector.load %arg3[%c0_12, %c0_13] : memref<16x128xf32, #tpu.memory_space<vmem>>, vector<16x128xf32>
    %cst_14 = arith.constant dense<0.000000e+00> : vector<16x128xf32>
    %23 = tpu.matmul %21, %22, %cst_14 {dimension_numbers = #tpu.dot_dimension_numbers<[1], [0], [0], [1], [0, 0, 1, 1], [], []>} : vector<16x16xf32>, vector<16x128xf32>, vector<16x128xf32> -> vector<16x128xf32>
    %c0_15 = arith.constant 0 : index
    %c0_16 = arith.constant 0 : index
    %24 = vector.load %arg9[%c0_15, %c0_16] : memref<16x128xf32, #tpu.memory_space<vmem>>, vector<16x128xf32>
    tpu.vector_store %arg9[%c0_15, %c0_16], %23 {strides = array<i32>} : memref<16x128xf32, #tpu.memory_space<vmem>>, vector<16x128xf32>,
    %cst_17 = arith.constant 0x7F800000 : f32
    %25 = vector.broadcast %cst_17 : f32 to vector<16x128xf32>
    %c0_18 = arith.constant 0 : index
    %c0_19 = arith.constant 0 : index
    %26 = vector.load %arg10[%c0_18, %c0_19] : memref<16x128xf32, #tpu.memory_space<vmem>>, vector<16x128xf32>
    tpu.vector_store %arg10[%c0_18, %c0_19], %25 {strides = array<i32>} : memref<16x128xf32, #tpu.memory_space<vmem>>, vector<16x128xf32>,
    %cst_20 = arith.constant 5.120000e+02 : bf16
    %c0_i32 = arith.constant 0 : i32
    %c2_i32 = arith.constant 2 : i32
    %27 = arith.addi %c0_i32, %c2_i32 : i32
    %c1_i32 = arith.constant 1 : i32
    scf.for %arg12 = %c0_i32 to %27 step %c1_i32  : i32 {
      %c8_i32_50 = arith.constant 8 : i32
      %62 = arith.muli %arg12, %c8_i32_50 : i32
      %63 = tpu.assume_multiple %62, 8 : i32
      %c0_51 = arith.constant 0 : index
      %c0_52 = arith.constant 0 : index
      %64 = vector.load %arg9[%c0_51, %c0_52] : memref<16x128xf32, #tpu.memory_space<vmem>>, vector<16x128xf32>
      %65 = arith.index_cast %63 : i32 to index
      %c0_53 = arith.constant 0 : index
      %66 = vector.load %arg9[%65, %c0_53] : memref<16x128xf32, #tpu.memory_space<vmem>>, vector<8x128xf32>
      %67 = vector.extract_strided_slice %66 {offsets = [0, 0], sizes = [1, 128], strides = [1, 1]} : vector<8x128xf32> to vector<1x128xf32>
      %68 = vector.broadcast %67 : vector<1x128xf32> to vector<16x128xf32>
      %69 = arith.cmpf ole, %64, %68 : vector<16x128xf32>
      %70 = arith.extui %69 : vector<16x128xi1> to vector<16x128xi32>
      %71 = arith.sitofp %70 : vector<16x128xi32> to vector<16x128xf32>
      %72 = arith.truncf %71 : vector<16x128xf32> to vector<16x128xbf16>
      %c0_i32_54 = arith.constant 0 : i32
      %73 = arith.addi %63, %c0_i32_54 : i32
      %74 = vector.broadcast %73 : i32 to vector<16x128xi32>
      %75 = arith.cmpi eq, %20, %74 : vector<16x128xi32>
      %76 = vector.broadcast %cst_20 : bf16 to vector<16x128xbf16>
      %77 = arith.select %75, %76, %72 : vector<16x128xi1>, vector<16x128xbf16>
      %c0_55 = arith.constant 0 : index
      %c0_56 = arith.constant 0 : index
      %78 = vector.load %arg11[%c0_55, %c0_56] : memref<16x1024xbf16, #tpu.memory_space<vmem>>, vector<16x128xbf16>
      tpu.vector_store %arg11[%c0_55, %c0_56], %77 {strides = array<i32>} : memref<16x1024xbf16, #tpu.memory_space<vmem>>, vector<16x128xbf16>,
      %79 = vector.extract_strided_slice %66 {offsets = [1, 0], sizes = [1, 128], strides = [1, 1]} : vector<8x128xf32> to vector<1x128xf32>
      %80 = vector.broadcast %79 : vector<1x128xf32> to vector<16x128xf32>
      %81 = arith.cmpf ole, %64, %80 : vector<16x128xf32>
      %82 = arith.extui %81 : vector<16x128xi1> to vector<16x128xi32>
      %83 = arith.sitofp %82 : vector<16x128xi32> to vector<16x128xf32>
      %84 = arith.truncf %83 : vector<16x128xf32> to vector<16x128xbf16>
      %c1_i32_57 = arith.constant 1 : i32
      %85 = arith.addi %63, %c1_i32_57 : i32
      %86 = vector.broadcast %85 : i32 to vector<16x128xi32>
      %87 = arith.cmpi eq, %20, %86 : vector<16x128xi32>
      %88 = vector.broadcast %cst_20 : bf16 to vector<16x128xbf16>
      %89 = arith.select %87, %88, %84 : vector<16x128xi1>, vector<16x128xbf16>
      %c0_58 = arith.constant 0 : index
      %c128 = arith.constant 128 : index
      %90 = vector.load %arg11[%c0_58, %c128] : memref<16x1024xbf16, #tpu.memory_space<vmem>>, vector<16x128xbf16>
      tpu.vector_store %arg11[%c0_58, %c128], %89 {strides = array<i32>} : memref<16x1024xbf16, #tpu.memory_space<vmem>>, vector<16x128xbf16>,
      %91 = vector.extract_strided_slice %66 {offsets = [2, 0], sizes = [1, 128], strides = [1, 1]} : vector<8x128xf32> to vector<1x128xf32>
      %92 = vector.broadcast %91 : vector<1x128xf32> to vector<16x128xf32>
      %93 = arith.cmpf ole, %64, %92 : vector<16x128xf32>
      %94 = arith.extui %93 : vector<16x128xi1> to vector<16x128xi32>
      %95 = arith.sitofp %94 : vector<16x128xi32> to vector<16x128xf32>
      %96 = arith.truncf %95 : vector<16x128xf32> to vector<16x128xbf16>
      %c2_i32_59 = arith.constant 2 : i32
      %97 = arith.addi %63, %c2_i32_59 : i32
      %98 = vector.broadcast %97 : i32 to vector<16x128xi32>
      %99 = arith.cmpi eq, %20, %98 : vector<16x128xi32>
      %100 = vector.broadcast %cst_20 : bf16 to vector<16x128xbf16>
      %101 = arith.select %99, %100, %96 : vector<16x128xi1>, vector<16x128xbf16>
      %c0_60 = arith.constant 0 : index
      %c256 = arith.constant 256 : index
      %102 = vector.load %arg11[%c0_60, %c256] : memref<16x1024xbf16, #tpu.memory_space<vmem>>, vector<16x128xbf16>
      tpu.vector_store %arg11[%c0_60, %c256], %101 {strides = array<i32>} : memref<16x1024xbf16, #tpu.memory_space<vmem>>, vector<16x128xbf16>,
      %103 = vector.extract_strided_slice %66 {offsets = [3, 0], sizes = [1, 128], strides = [1, 1]} : vector<8x128xf32> to vector<1x128xf32>
      %104 = vector.broadcast %103 : vector<1x128xf32> to vector<16x128xf32>
      %105 = arith.cmpf ole, %64, %104 : vector<16x128xf32>
      %106 = arith.extui %105 : vector<16x128xi1> to vector<16x128xi32>
      %107 = arith.sitofp %106 : vector<16x128xi32> to vector<16x128xf32>
      %108 = arith.truncf %107 : vector<16x128xf32> to vector<16x128xbf16>
      %c3_i32 = arith.constant 3 : i32
      %109 = arith.addi %63, %c3_i32 : i32
      %110 = vector.broadcast %109 : i32 to vector<16x128xi32>
      %111 = arith.cmpi eq, %20, %110 : vector<16x128xi32>
      %112 = vector.broadcast %cst_20 : bf16 to vector<16x128xbf16>
      %113 = arith.select %111, %112, %108 : vector<16x128xi1>, vector<16x128xbf16>
      %c0_61 = arith.constant 0 : index
      %c384 = arith.constant 384 : index
      %114 = vector.load %arg11[%c0_61, %c384] : memref<16x1024xbf16, #tpu.memory_space<vmem>>, vector<16x128xbf16>
      tpu.vector_store %arg11[%c0_61, %c384], %113 {strides = array<i32>} : memref<16x1024xbf16, #tpu.memory_space<vmem>>, vector<16x128xbf16>,
      %115 = vector.extract_strided_slice %66 {offsets = [4, 0], sizes = [1, 128], strides = [1, 1]} : vector<8x128xf32> to vector<1x128xf32>
      %116 = vector.broadcast %115 : vector<1x128xf32> to vector<16x128xf32>
      %117 = arith.cmpf ole, %64, %116 : vector<16x128xf32>
      %118 = arith.extui %117 : vector<16x128xi1> to vector<16x128xi32>
      %119 = arith.sitofp %118 : vector<16x128xi32> to vector<16x128xf32>
      %120 = arith.truncf %119 : vector<16x128xf32> to vector<16x128xbf16>
      %c4_i32 = arith.constant 4 : i32
      %121 = arith.addi %63, %c4_i32 : i32
      %122 = vector.broadcast %121 : i32 to vector<16x128xi32>
      %123 = arith.cmpi eq, %20, %122 : vector<16x128xi32>
      %124 = vector.broadcast %cst_20 : bf16 to vector<16x128xbf16>
      %125 = arith.select %123, %124, %120 : vector<16x128xi1>, vector<16x128xbf16>
      %c0_62 = arith.constant 0 : index
      %c512 = arith.constant 512 : index
      %126 = vector.load %arg11[%c0_62, %c512] : memref<16x1024xbf16, #tpu.memory_space<vmem>>, vector<16x128xbf16>
      tpu.vector_store %arg11[%c0_62, %c512], %125 {strides = array<i32>} : memref<16x1024xbf16, #tpu.memory_space<vmem>>, vector<16x128xbf16>,
      %127 = vector.extract_strided_slice %66 {offsets = [5, 0], sizes = [1, 128], strides = [1, 1]} : vector<8x128xf32> to vector<1x128xf32>
      %128 = vector.broadcast %127 : vector<1x128xf32> to vector<16x128xf32>
      %129 = arith.cmpf ole, %64, %128 : vector<16x128xf32>
      %130 = arith.extui %129 : vector<16x128xi1> to vector<16x128xi32>
      %131 = arith.sitofp %130 : vector<16x128xi32> to vector<16x128xf32>
      %132 = arith.truncf %131 : vector<16x128xf32> to vector<16x128xbf16>
      %c5_i32 = arith.constant 5 : i32
      %133 = arith.addi %63, %c5_i32 : i32
      %134 = vector.broadcast %133 : i32 to vector<16x128xi32>
      %135 = arith.cmpi eq, %20, %134 : vector<16x128xi32>
      %136 = vector.broadcast %cst_20 : bf16 to vector<16x128xbf16>
      %137 = arith.select %135, %136, %132 : vector<16x128xi1>, vector<16x128xbf16>
      %c0_63 = arith.constant 0 : index
      %c640 = arith.constant 640 : index
      %138 = vector.load %arg11[%c0_63, %c640] : memref<16x1024xbf16, #tpu.memory_space<vmem>>, vector<16x128xbf16>
      tpu.vector_store %arg11[%c0_63, %c640], %137 {strides = array<i32>} : memref<16x1024xbf16, #tpu.memory_space<vmem>>, vector<16x128xbf16>,
      %139 = vector.extract_strided_slice %66 {offsets = [6, 0], sizes = [1, 128], strides = [1, 1]} : vector<8x128xf32> to vector<1x128xf32>
      %140 = vector.broadcast %139 : vector<1x128xf32> to vector<16x128xf32>
      %141 = arith.cmpf ole, %64, %140 : vector<16x128xf32>
      %142 = arith.extui %141 : vector<16x128xi1> to vector<16x128xi32>
      %143 = arith.sitofp %142 : vector<16x128xi32> to vector<16x128xf32>
      %144 = arith.truncf %143 : vector<16x128xf32> to vector<16x128xbf16>
      %c6_i32 = arith.constant 6 : i32
      %145 = arith.addi %63, %c6_i32 : i32
      %146 = vector.broadcast %145 : i32 to vector<16x128xi32>
      %147 = arith.cmpi eq, %20, %146 : vector<16x128xi32>
      %148 = vector.broadcast %cst_20 : bf16 to vector<16x128xbf16>
      %149 = arith.select %147, %148, %144 : vector<16x128xi1>, vector<16x128xbf16>
      %c0_64 = arith.constant 0 : index
      %c768 = arith.constant 768 : index
      %150 = vector.load %arg11[%c0_64, %c768] : memref<16x1024xbf16, #tpu.memory_space<vmem>>, vector<16x128xbf16>
      tpu.vector_store %arg11[%c0_64, %c768], %149 {strides = array<i32>} : memref<16x1024xbf16, #tpu.memory_space<vmem>>, vector<16x128xbf16>,
      %151 = vector.extract_strided_slice %66 {offsets = [7, 0], sizes = [1, 128], strides = [1, 1]} : vector<8x128xf32> to vector<1x128xf32>
      %152 = vector.broadcast %151 : vector<1x128xf32> to vector<16x128xf32>
      %153 = arith.cmpf ole, %64, %152 : vector<16x128xf32>
      %154 = arith.extui %153 : vector<16x128xi1> to vector<16x128xi32>
      %155 = arith.sitofp %154 : vector<16x128xi32> to vector<16x128xf32>
      %156 = arith.truncf %155 : vector<16x128xf32> to vector<16x128xbf16>
      %c7_i32 = arith.constant 7 : i32
      %157 = arith.addi %63, %c7_i32 : i32
      %158 = vector.broadcast %157 : i32 to vector<16x128xi32>
      %159 = arith.cmpi eq, %20, %158 : vector<16x128xi32>
      %160 = vector.broadcast %cst_20 : bf16 to vector<16x128xbf16>
      %161 = arith.select %159, %160, %156 : vector<16x128xi1>, vector<16x128xbf16>
      %c0_65 = arith.constant 0 : index
      %c896 = arith.constant 896 : index
      %162 = vector.load %arg11[%c0_65, %c896] : memref<16x1024xbf16, #tpu.memory_space<vmem>>, vector<16x128xbf16>
      tpu.vector_store %arg11[%c0_65, %c896], %161 {strides = array<i32>} : memref<16x1024xbf16, #tpu.memory_space<vmem>>, vector<16x128xbf16>,
      %c0_66 = arith.constant 0 : index
      %c0_67 = arith.constant 0 : index
      %163 = vector.load %arg8[%c0_66, %c0_67] : memref<16x16xbf16, #tpu.memory_space<vmem>>, vector<16x16xbf16>
      %c0_68 = arith.constant 0 : index
      %c0_69 = arith.constant 0 : index
      %164 = vector.load %arg11[%c0_68, %c0_69] : memref<16x1024xbf16, #tpu.memory_space<vmem>>, vector<16x1024xbf16>
      %cst_70 = arith.constant dense<0.000000e+00> : vector<16x1024xf32>
      %165 = tpu.matmul %163, %164, %cst_70 {dimension_numbers = #tpu.dot_dimension_numbers<[1], [0], [0], [1], [0, 0, 1, 1], [], []>} : vector<16x16xbf16>, vector<16x1024xbf16>, vector<16x1024xf32> -> vector<16x1024xf32>
      %c0_71 = arith.constant 0 : index
      %c0_72 = arith.constant 0 : index
      %166 = vector.load %arg10[%c0_71, %c0_72] : memref<16x128xf32, #tpu.memory_space<vmem>>, vector<16x128xf32>
      %167 = vector.extract_strided_slice %165 {offsets = [0, 0], sizes = [16, 128], strides = [1, 1]} : vector<16x1024xf32> to vector<16x128xf32>
      %168 = vector.broadcast %19 : vector<16x1xf32> to vector<16x128xf32>
      %169 = arith.cmpf oge, %167, %168 : vector<16x128xf32>
      %170 = vector.extract_strided_slice %66 {offsets = [0, 0], sizes = [1, 128], strides = [1, 1]} : vector<8x128xf32> to vector<1x128xf32>
      %cst_73 = arith.constant 0x7F800000 : f32
      %171 = vector.shape_cast %170 : vector<1x128xf32> to vector<1x128xf32>
      %172 = vector.broadcast %171 : vector<1x128xf32> to vector<16x128xf32>
      %173 = vector.broadcast %cst_73 : f32 to vector<16x128xf32>
      %174 = arith.select %169, %172, %173 : vector<16x128xi1>, vector<16x128xf32>
      %175 = arith.minimumf %166, %174 : vector<16x128xf32>
      %176 = vector.extract_strided_slice %165 {offsets = [0, 128], sizes = [16, 128], strides = [1, 1]} : vector<16x1024xf32> to vector<16x128xf32>
      %177 = vector.broadcast %19 : vector<16x1xf32> to vector<16x128xf32>
      %178 = arith.cmpf oge, %176, %177 : vector<16x128xf32>
      %179 = vector.extract_strided_slice %66 {offsets = [1, 0], sizes = [1, 128], strides = [1, 1]} : vector<8x128xf32> to vector<1x128xf32>
      %cst_74 = arith.constant 0x7F800000 : f32
      %180 = vector.shape_cast %179 : vector<1x128xf32> to vector<1x128xf32>
      %181 = vector.broadcast %180 : vector<1x128xf32> to vector<16x128xf32>
      %182 = vector.broadcast %cst_74 : f32 to vector<16x128xf32>
      %183 = arith.select %178, %181, %182 : vector<16x128xi1>, vector<16x128xf32>
      %184 = arith.minimumf %175, %183 : vector<16x128xf32>
      %185 = vector.extract_strided_slice %165 {offsets = [0, 256], sizes = [16, 128], strides = [1, 1]} : vector<16x1024xf32> to vector<16x128xf32>
      %186 = vector.broadcast %19 : vector<16x1xf32> to vector<16x128xf32>
      %187 = arith.cmpf oge, %185, %186 : vector<16x128xf32>
      %188 = vector.extract_strided_slice %66 {offsets = [2, 0], sizes = [1, 128], strides = [1, 1]} : vector<8x128xf32> to vector<1x128xf32>
      %cst_75 = arith.constant 0x7F800000 : f32
      %189 = vector.shape_cast %188 : vector<1x128xf32> to vector<1x128xf32>
      %190 = vector.broadcast %189 : vector<1x128xf32> to vector<16x128xf32>
      %191 = vector.broadcast %cst_75 : f32 to vector<16x128xf32>
      %192 = arith.select %187, %190, %191 : vector<16x128xi1>, vector<16x128xf32>
      %193 = arith.minimumf %184, %192 : vector<16x128xf32>
      %194 = vector.extract_strided_slice %165 {offsets = [0, 384], sizes = [16, 128], strides = [1, 1]} : vector<16x1024xf32> to vector<16x128xf32>
      %195 = vector.broadcast %19 : vector<16x1xf32> to vector<16x128xf32>
      %196 = arith.cmpf oge, %194, %195 : vector<16x128xf32>
      %197 = vector.extract_strided_slice %66 {offsets = [3, 0], sizes = [1, 128], strides = [1, 1]} : vector<8x128xf32> to vector<1x128xf32>
      %cst_76 = arith.constant 0x7F800000 : f32
      %198 = vector.shape_cast %197 : vector<1x128xf32> to vector<1x128xf32>
      %199 = vector.broadcast %198 : vector<1x128xf32> to vector<16x128xf32>
      %200 = vector.broadcast %cst_76 : f32 to vector<16x128xf32>
      %201 = arith.select %196, %199, %200 : vector<16x128xi1>, vector<16x128xf32>
      %202 = arith.minimumf %193, %201 : vector<16x128xf32>
      %203 = vector.extract_strided_slice %165 {offsets = [0, 512], sizes = [16, 128], strides = [1, 1]} : vector<16x1024xf32> to vector<16x128xf32>
      %204 = vector.broadcast %19 : vector<16x1xf32> to vector<16x128xf32>
      %205 = arith.cmpf oge, %203, %204 : vector<16x128xf32>
      %206 = vector.extract_strided_slice %66 {offsets = [4, 0], sizes = [1, 128], strides = [1, 1]} : vector<8x128xf32> to vector<1x128xf32>
      %cst_77 = arith.constant 0x7F800000 : f32
      %207 = vector.shape_cast %206 : vector<1x128xf32> to vector<1x128xf32>
      %208 = vector.broadcast %207 : vector<1x128xf32> to vector<16x128xf32>
      %209 = vector.broadcast %cst_77 : f32 to vector<16x128xf32>
      %210 = arith.select %205, %208, %209 : vector<16x128xi1>, vector<16x128xf32>
      %211 = arith.minimumf %202, %210 : vector<16x128xf32>
      %212 = vector.extract_strided_slice %165 {offsets = [0, 640], sizes = [16, 128], strides = [1, 1]} : vector<16x1024xf32> to vector<16x128xf32>
      %213 = vector.broadcast %19 : vector<16x1xf32> to vector<16x128xf32>
      %214 = arith.cmpf oge, %212, %213 : vector<16x128xf32>
      %215 = vector.extract_strided_slice %66 {offsets = [5, 0], sizes = [1, 128], strides = [1, 1]} : vector<8x128xf32> to vector<1x128xf32>
      %cst_78 = arith.constant 0x7F800000 : f32
      %216 = vector.shape_cast %215 : vector<1x128xf32> to vector<1x128xf32>
      %217 = vector.broadcast %216 : vector<1x128xf32> to vector<16x128xf32>
      %218 = vector.broadcast %cst_78 : f32 to vector<16x128xf32>
      %219 = arith.select %214, %217, %218 : vector<16x128xi1>, vector<16x128xf32>
      %220 = arith.minimumf %211, %219 : vector<16x128xf32>
      %221 = vector.extract_strided_slice %165 {offsets = [0, 768], sizes = [16, 128], strides = [1, 1]} : vector<16x1024xf32> to vector<16x128xf32>
      %222 = vector.broadcast %19 : vector<16x1xf32> to vector<16x128xf32>
      %223 = arith.cmpf oge, %221, %222 : vector<16x128xf32>
      %224 = vector.extract_strided_slice %66 {offsets = [6, 0], sizes = [1, 128], strides = [1, 1]} : vector<8x128xf32> to vector<1x128xf32>
      %cst_79 = arith.constant 0x7F800000 : f32
      %225 = vector.shape_cast %224 : vector<1x128xf32> to vector<1x128xf32>
      %226 = vector.broadcast %225 : vector<1x128xf32> to vector<16x128xf32>
      %227 = vector.broadcast %cst_79 : f32 to vector<16x128xf32>
      %228 = arith.select %223, %226, %227 : vector<16x128xi1>, vector<16x128xf32>
      %229 = arith.minimumf %220, %228 : vector<16x128xf32>
      %230 = vector.extract_strided_slice %165 {offsets = [0, 896], sizes = [16, 128], strides = [1, 1]} : vector<16x1024xf32> to vector<16x128xf32>
      %231 = vector.broadcast %19 : vector<16x1xf32> to vector<16x128xf32>
      %232 = arith.cmpf oge, %230, %231 : vector<16x128xf32>
      %233 = vector.extract_strided_slice %66 {offsets = [7, 0], sizes = [1, 128], strides = [1, 1]} : vector<8x128xf32> to vector<1x128xf32>
      %cst_80 = arith.constant 0x7F800000 : f32
      %234 = vector.shape_cast %233 : vector<1x128xf32> to vector<1x128xf32>
      %235 = vector.broadcast %234 : vector<1x128xf32> to vector<16x128xf32>
      %236 = vector.broadcast %cst_80 : f32 to vector<16x128xf32>
      %237 = arith.select %232, %235, %236 : vector<16x128xi1>, vector<16x128xf32>
      %238 = arith.minimumf %229, %237 : vector<16x128xf32>
      %c0_81 = arith.constant 0 : index
      %c0_82 = arith.constant 0 : index
      %239 = vector.load %arg10[%c0_81, %c0_82] : memref<16x128xf32, #tpu.memory_space<vmem>>, vector<16x128xf32>
      tpu.vector_store %arg10[%c0_81, %c0_82], %238 {strides = array<i32>} : memref<16x128xf32, #tpu.memory_space<vmem>>, vector<16x128xf32>,
    }
    %c2_i32_21 = arith.constant 2 : i32
    %c0_22 = arith.constant 0 : index
    %c0_23 = arith.constant 0 : index
    %28 = vector.load %arg10[%c0_22, %c0_23] : memref<16x128xf32, #tpu.memory_space<vmem>>, vector<16x128xf32>
    %c0_24 = arith.constant 0 : index
    %c0_25 = arith.constant 0 : index
    %29 = vector.load %arg4[%c0_24, %c0_25] : memref<1x128xf32, #tpu.memory_space<vmem>>, vector<1x128xf32>
    %30 = vector.broadcast %29 : vector<1x128xf32> to vector<16x128xf32>
    %31 = arith.addf %28, %30 : vector<16x128xf32>
    %cst_26 = arith.constant 0.000000e+00 : f32
    %32 = vector.broadcast %cst_26 : f32 to vector<16x128xf32>
    %33 = arith.maximumf %31, %32 : vector<16x128xf32>
    %c0_27 = arith.constant 0 : index
    %c0_28 = arith.constant 0 : index
    %34 = vector.load %arg5[%c0_27, %c0_28] : memref<128x128xf32, #tpu.memory_space<vmem>>, vector<128x128xf32>
    %cst_29 = arith.constant dense<0.000000e+00> : vector<16x128xf32>
    %35 = tpu.matmul %33, %34, %cst_29 {dimension_numbers = #tpu.dot_dimension_numbers<[1], [0], [0], [1], [0, 0, 1, 1], [], []>} : vector<16x128xf32>, vector<128x128xf32>, vector<16x128xf32> -> vector<16x128xf32>
    %c0_30 = arith.constant 0 : index
    %c0_31 = arith.constant 0 : index
    %36 = vector.load %arg9[%c0_30, %c0_31] : memref<16x128xf32, #tpu.memory_space<vmem>>, vector<16x128xf32>
    tpu.vector_store %arg9[%c0_30, %c0_31], %35 {strides = array<i32>} : memref<16x128xf32, #tpu.memory_space<vmem>>, vector<16x128xf32>,
    %cst_32 = arith.constant 0x7F800000 : f32
    %37 = vector.broadcast %cst_32 : f32 to vector<16x128xf32>
    %c0_33 = arith.constant 0 : index
    %c0_34 = arith.constant 0 : index
    %38 = vector.load %arg10[%c0_33, %c0_34] : memref<16x128xf32, #tpu.memory_space<vmem>>, vector<16x128xf32>
    tpu.vector_store %arg10[%c0_33, %c0_34], %37 {strides = array<i32>} : memref<16x128xf32, #tpu.memory_space<vmem>>, vector<16x128xf32>,
    %cst_35 = arith.constant 5.120000e+02 : bf16
    %c0_i32_36 = arith.constant 0 : i32
    %c2_i32_37 = arith.constant 2 : i32
    %39 = arith.addi %c0_i32_36, %c2_i32_37 : i32
    %c1_i32_38 = arith.constant 1 : i32
    scf.for %arg12 = %c0_i32_36 to %39 step %c1_i32_38  : i32 {
      %c8_i32_50 = arith.constant 8 : i32
      %62 = arith.muli %arg12, %c8_i32_50 : i32
      %63 = tpu.assume_multiple %62, 8 : i32
      %c0_51 = arith.constant 0 : index
      %c0_52 = arith.constant 0 : index
      %64 = vector.load %arg9[%c0_51, %c0_52] : memref<16x128xf32, #tpu.memory_space<vmem>>, vector<16x128xf32>
      %65 = arith.index_cast %63 : i32 to index
      %c0_53 = arith.constant 0 : index
      %66 = vector.load %arg9[%65, %c0_53] : memref<16x128xf32, #tpu.memory_space<vmem>>, vector<8x128xf32>
      %67 = vector.extract_strided_slice %66 {offsets = [0, 0], sizes = [1, 128], strides = [1, 1]} : vector<8x128xf32> to vector<1x128xf32>
      %68 = vector.broadcast %67 : vector<1x128xf32> to vector<16x128xf32>
      %69 = arith.cmpf ole, %64, %68 : vector<16x128xf32>
      %70 = arith.extui %69 : vector<16x128xi1> to vector<16x128xi32>
      %71 = arith.sitofp %70 : vector<16x128xi32> to vector<16x128xf32>
      %72 = arith.truncf %71 : vector<16x128xf32> to vector<16x128xbf16>
      %c0_i32_54 = arith.constant 0 : i32
      %73 = arith.addi %63, %c0_i32_54 : i32
      %74 = vector.broadcast %73 : i32 to vector<16x128xi32>
      %75 = arith.cmpi eq, %20, %74 : vector<16x128xi32>
      %76 = vector.broadcast %cst_35 : bf16 to vector<16x128xbf16>
      %77 = arith.select %75, %76, %72 : vector<16x128xi1>, vector<16x128xbf16>
      %c0_55 = arith.constant 0 : index
      %c0_56 = arith.constant 0 : index
      %78 = vector.load %arg11[%c0_55, %c0_56] : memref<16x1024xbf16, #tpu.memory_space<vmem>>, vector<16x128xbf16>
      tpu.vector_store %arg11[%c0_55, %c0_56], %77 {strides = array<i32>} : memref<16x1024xbf16, #tpu.memory_space<vmem>>, vector<16x128xbf16>,
      %79 = vector.extract_strided_slice %66 {offsets = [1, 0], sizes = [1, 128], strides = [1, 1]} : vector<8x128xf32> to vector<1x128xf32>
      %80 = vector.broadcast %79 : vector<1x128xf32> to vector<16x128xf32>
      %81 = arith.cmpf ole, %64, %80 : vector<16x128xf32>
      %82 = arith.extui %81 : vector<16x128xi1> to vector<16x128xi32>
      %83 = arith.sitofp %82 : vector<16x128xi32> to vector<16x128xf32>
      %84 = arith.truncf %83 : vector<16x128xf32> to vector<16x128xbf16>
      %c1_i32_57 = arith.constant 1 : i32
      %85 = arith.addi %63, %c1_i32_57 : i32
      %86 = vector.broadcast %85 : i32 to vector<16x128xi32>
      %87 = arith.cmpi eq, %20, %86 : vector<16x128xi32>
      %88 = vector.broadcast %cst_35 : bf16 to vector<16x128xbf16>
      %89 = arith.select %87, %88, %84 : vector<16x128xi1>, vector<16x128xbf16>
      %c0_58 = arith.constant 0 : index
      %c128 = arith.constant 128 : index
      %90 = vector.load %arg11[%c0_58, %c128] : memref<16x1024xbf16, #tpu.memory_space<vmem>>, vector<16x128xbf16>
      tpu.vector_store %arg11[%c0_58, %c128], %89 {strides = array<i32>} : memref<16x1024xbf16, #tpu.memory_space<vmem>>, vector<16x128xbf16>,
      %91 = vector.extract_strided_slice %66 {offsets = [2, 0], sizes = [1, 128], strides = [1, 1]} : vector<8x128xf32> to vector<1x128xf32>
      %92 = vector.broadcast %91 : vector<1x128xf32> to vector<16x128xf32>
      %93 = arith.cmpf ole, %64, %92 : vector<16x128xf32>
      %94 = arith.extui %93 : vector<16x128xi1> to vector<16x128xi32>
      %95 = arith.sitofp %94 : vector<16x128xi32> to vector<16x128xf32>
      %96 = arith.truncf %95 : vector<16x128xf32> to vector<16x128xbf16>
      %c2_i32_59 = arith.constant 2 : i32
      %97 = arith.addi %63, %c2_i32_59 : i32
      %98 = vector.broadcast %97 : i32 to vector<16x128xi32>
      %99 = arith.cmpi eq, %20, %98 : vector<16x128xi32>
      %100 = vector.broadcast %cst_35 : bf16 to vector<16x128xbf16>
      %101 = arith.select %99, %100, %96 : vector<16x128xi1>, vector<16x128xbf16>
      %c0_60 = arith.constant 0 : index
      %c256 = arith.constant 256 : index
      %102 = vector.load %arg11[%c0_60, %c256] : memref<16x1024xbf16, #tpu.memory_space<vmem>>, vector<16x128xbf16>
      tpu.vector_store %arg11[%c0_60, %c256], %101 {strides = array<i32>} : memref<16x1024xbf16, #tpu.memory_space<vmem>>, vector<16x128xbf16>,
      %103 = vector.extract_strided_slice %66 {offsets = [3, 0], sizes = [1, 128], strides = [1, 1]} : vector<8x128xf32> to vector<1x128xf32>
      %104 = vector.broadcast %103 : vector<1x128xf32> to vector<16x128xf32>
      %105 = arith.cmpf ole, %64, %104 : vector<16x128xf32>
      %106 = arith.extui %105 : vector<16x128xi1> to vector<16x128xi32>
      %107 = arith.sitofp %106 : vector<16x128xi32> to vector<16x128xf32>
      %108 = arith.truncf %107 : vector<16x128xf32> to vector<16x128xbf16>
      %c3_i32 = arith.constant 3 : i32
      %109 = arith.addi %63, %c3_i32 : i32
      %110 = vector.broadcast %109 : i32 to vector<16x128xi32>
      %111 = arith.cmpi eq, %20, %110 : vector<16x128xi32>
      %112 = vector.broadcast %cst_35 : bf16 to vector<16x128xbf16>
      %113 = arith.select %111, %112, %108 : vector<16x128xi1>, vector<16x128xbf16>
      %c0_61 = arith.constant 0 : index
      %c384 = arith.constant 384 : index
      %114 = vector.load %arg11[%c0_61, %c384] : memref<16x1024xbf16, #tpu.memory_space<vmem>>, vector<16x128xbf16>
      tpu.vector_store %arg11[%c0_61, %c384], %113 {strides = array<i32>} : memref<16x1024xbf16, #tpu.memory_space<vmem>>, vector<16x128xbf16>,
      %115 = vector.extract_strided_slice %66 {offsets = [4, 0], sizes = [1, 128], strides = [1, 1]} : vector<8x128xf32> to vector<1x128xf32>
      %116 = vector.broadcast %115 : vector<1x128xf32> to vector<16x128xf32>
      %117 = arith.cmpf ole, %64, %116 : vector<16x128xf32>
      %118 = arith.extui %117 : vector<16x128xi1> to vector<16x128xi32>
      %119 = arith.sitofp %118 : vector<16x128xi32> to vector<16x128xf32>
      %120 = arith.truncf %119 : vector<16x128xf32> to vector<16x128xbf16>
      %c4_i32 = arith.constant 4 : i32
      %121 = arith.addi %63, %c4_i32 : i32
      %122 = vector.broadcast %121 : i32 to vector<16x128xi32>
      %123 = arith.cmpi eq, %20, %122 : vector<16x128xi32>
      %124 = vector.broadcast %cst_35 : bf16 to vector<16x128xbf16>
      %125 = arith.select %123, %124, %120 : vector<16x128xi1>, vector<16x128xbf16>
      %c0_62 = arith.constant 0 : index
      %c512 = arith.constant 512 : index
      %126 = vector.load %arg11[%c0_62, %c512] : memref<16x1024xbf16, #tpu.memory_space<vmem>>, vector<16x128xbf16>
      tpu.vector_store %arg11[%c0_62, %c512], %125 {strides = array<i32>} : memref<16x1024xbf16, #tpu.memory_space<vmem>>, vector<16x128xbf16>,
      %127 = vector.extract_strided_slice %66 {offsets = [5, 0], sizes = [1, 128], strides = [1, 1]} : vector<8x128xf32> to vector<1x128xf32>
      %128 = vector.broadcast %127 : vector<1x128xf32> to vector<16x128xf32>
      %129 = arith.cmpf ole, %64, %128 : vector<16x128xf32>
      %130 = arith.extui %129 : vector<16x128xi1> to vector<16x128xi32>
      %131 = arith.sitofp %130 : vector<16x128xi32> to vector<16x128xf32>
      %132 = arith.truncf %131 : vector<16x128xf32> to vector<16x128xbf16>
      %c5_i32 = arith.constant 5 : i32
      %133 = arith.addi %63, %c5_i32 : i32
      %134 = vector.broadcast %133 : i32 to vector<16x128xi32>
      %135 = arith.cmpi eq, %20, %134 : vector<16x128xi32>
      %136 = vector.broadcast %cst_35 : bf16 to vector<16x128xbf16>
      %137 = arith.select %135, %136, %132 : vector<16x128xi1>, vector<16x128xbf16>
      %c0_63 = arith.constant 0 : index
      %c640 = arith.constant 640 : index
      %138 = vector.load %arg11[%c0_63, %c640] : memref<16x1024xbf16, #tpu.memory_space<vmem>>, vector<16x128xbf16>
      tpu.vector_store %arg11[%c0_63, %c640], %137 {strides = array<i32>} : memref<16x1024xbf16, #tpu.memory_space<vmem>>, vector<16x128xbf16>,
      %139 = vector.extract_strided_slice %66 {offsets = [6, 0], sizes = [1, 128], strides = [1, 1]} : vector<8x128xf32> to vector<1x128xf32>
      %140 = vector.broadcast %139 : vector<1x128xf32> to vector<16x128xf32>
      %141 = arith.cmpf ole, %64, %140 : vector<16x128xf32>
      %142 = arith.extui %141 : vector<16x128xi1> to vector<16x128xi32>
      %143 = arith.sitofp %142 : vector<16x128xi32> to vector<16x128xf32>
      %144 = arith.truncf %143 : vector<16x128xf32> to vector<16x128xbf16>
      %c6_i32 = arith.constant 6 : i32
      %145 = arith.addi %63, %c6_i32 : i32
      %146 = vector.broadcast %145 : i32 to vector<16x128xi32>
      %147 = arith.cmpi eq, %20, %146 : vector<16x128xi32>
      %148 = vector.broadcast %cst_35 : bf16 to vector<16x128xbf16>
      %149 = arith.select %147, %148, %144 : vector<16x128xi1>, vector<16x128xbf16>
      %c0_64 = arith.constant 0 : index
      %c768 = arith.constant 768 : index
      %150 = vector.load %arg11[%c0_64, %c768] : memref<16x1024xbf16, #tpu.memory_space<vmem>>, vector<16x128xbf16>
      tpu.vector_store %arg11[%c0_64, %c768], %149 {strides = array<i32>} : memref<16x1024xbf16, #tpu.memory_space<vmem>>, vector<16x128xbf16>,
      %151 = vector.extract_strided_slice %66 {offsets = [7, 0], sizes = [1, 128], strides = [1, 1]} : vector<8x128xf32> to vector<1x128xf32>
      %152 = vector.broadcast %151 : vector<1x128xf32> to vector<16x128xf32>
      %153 = arith.cmpf ole, %64, %152 : vector<16x128xf32>
      %154 = arith.extui %153 : vector<16x128xi1> to vector<16x128xi32>
      %155 = arith.sitofp %154 : vector<16x128xi32> to vector<16x128xf32>
      %156 = arith.truncf %155 : vector<16x128xf32> to vector<16x128xbf16>
      %c7_i32 = arith.constant 7 : i32
      %157 = arith.addi %63, %c7_i32 : i32
      %158 = vector.broadcast %157 : i32 to vector<16x128xi32>
      %159 = arith.cmpi eq, %20, %158 : vector<16x128xi32>
      %160 = vector.broadcast %cst_35 : bf16 to vector<16x128xbf16>
      %161 = arith.select %159, %160, %156 : vector<16x128xi1>, vector<16x128xbf16>
      %c0_65 = arith.constant 0 : index
      %c896 = arith.constant 896 : index
      %162 = vector.load %arg11[%c0_65, %c896] : memref<16x1024xbf16, #tpu.memory_space<vmem>>, vector<16x128xbf16>
      tpu.vector_store %arg11[%c0_65, %c896], %161 {strides = array<i32>} : memref<16x1024xbf16, #tpu.memory_space<vmem>>, vector<16x128xbf16>,
      %c0_66 = arith.constant 0 : index
      %c0_67 = arith.constant 0 : index
      %163 = vector.load %arg8[%c0_66, %c0_67] : memref<16x16xbf16, #tpu.memory_space<vmem>>, vector<16x16xbf16>
      %c0_68 = arith.constant 0 : index
      %c0_69 = arith.constant 0 : index
      %164 = vector.load %arg11[%c0_68, %c0_69] : memref<16x1024xbf16, #tpu.memory_space<vmem>>, vector<16x1024xbf16>
      %cst_70 = arith.constant dense<0.000000e+00> : vector<16x1024xf32>
      %165 = tpu.matmul %163, %164, %cst_70 {dimension_numbers = #tpu.dot_dimension_numbers<[1], [0], [0], [1], [0, 0, 1, 1], [], []>} : vector<16x16xbf16>, vector<16x1024xbf16>, vector<16x1024xf32> -> vector<16x1024xf32>
      %c0_71 = arith.constant 0 : index
      %c0_72 = arith.constant 0 : index
      %166 = vector.load %arg10[%c0_71, %c0_72] : memref<16x128xf32, #tpu.memory_space<vmem>>, vector<16x128xf32>
      %167 = vector.extract_strided_slice %165 {offsets = [0, 0], sizes = [16, 128], strides = [1, 1]} : vector<16x1024xf32> to vector<16x128xf32>
      %168 = vector.broadcast %19 : vector<16x1xf32> to vector<16x128xf32>
      %169 = arith.cmpf oge, %167, %168 : vector<16x128xf32>
      %170 = vector.extract_strided_slice %66 {offsets = [0, 0], sizes = [1, 128], strides = [1, 1]} : vector<8x128xf32> to vector<1x128xf32>
      %cst_73 = arith.constant 0x7F800000 : f32
      %171 = vector.shape_cast %170 : vector<1x128xf32> to vector<1x128xf32>
      %172 = vector.broadcast %171 : vector<1x128xf32> to vector<16x128xf32>
      %173 = vector.broadcast %cst_73 : f32 to vector<16x128xf32>
      %174 = arith.select %169, %172, %173 : vector<16x128xi1>, vector<16x128xf32>
      %175 = arith.minimumf %166, %174 : vector<16x128xf32>
      %176 = vector.extract_strided_slice %165 {offsets = [0, 128], sizes = [16, 128], strides = [1, 1]} : vector<16x1024xf32> to vector<16x128xf32>
      %177 = vector.broadcast %19 : vector<16x1xf32> to vector<16x128xf32>
      %178 = arith.cmpf oge, %176, %177 : vector<16x128xf32>
      %179 = vector.extract_strided_slice %66 {offsets = [1, 0], sizes = [1, 128], strides = [1, 1]} : vector<8x128xf32> to vector<1x128xf32>
      %cst_74 = arith.constant 0x7F800000 : f32
      %180 = vector.shape_cast %179 : vector<1x128xf32> to vector<1x128xf32>
      %181 = vector.broadcast %180 : vector<1x128xf32> to vector<16x128xf32>
      %182 = vector.broadcast %cst_74 : f32 to vector<16x128xf32>
      %183 = arith.select %178, %181, %182 : vector<16x128xi1>, vector<16x128xf32>
      %184 = arith.minimumf %175, %183 : vector<16x128xf32>
      %185 = vector.extract_strided_slice %165 {offsets = [0, 256], sizes = [16, 128], strides = [1, 1]} : vector<16x1024xf32> to vector<16x128xf32>
      %186 = vector.broadcast %19 : vector<16x1xf32> to vector<16x128xf32>
      %187 = arith.cmpf oge, %185, %186 : vector<16x128xf32>
      %188 = vector.extract_strided_slice %66 {offsets = [2, 0], sizes = [1, 128], strides = [1, 1]} : vector<8x128xf32> to vector<1x128xf32>
      %cst_75 = arith.constant 0x7F800000 : f32
      %189 = vector.shape_cast %188 : vector<1x128xf32> to vector<1x128xf32>
      %190 = vector.broadcast %189 : vector<1x128xf32> to vector<16x128xf32>
      %191 = vector.broadcast %cst_75 : f32 to vector<16x128xf32>
      %192 = arith.select %187, %190, %191 : vector<16x128xi1>, vector<16x128xf32>
      %193 = arith.minimumf %184, %192 : vector<16x128xf32>
      %194 = vector.extract_strided_slice %165 {offsets = [0, 384], sizes = [16, 128], strides = [1, 1]} : vector<16x1024xf32> to vector<16x128xf32>
      %195 = vector.broadcast %19 : vector<16x1xf32> to vector<16x128xf32>
      %196 = arith.cmpf oge, %194, %195 : vector<16x128xf32>
      %197 = vector.extract_strided_slice %66 {offsets = [3, 0], sizes = [1, 128], strides = [1, 1]} : vector<8x128xf32> to vector<1x128xf32>
      %cst_76 = arith.constant 0x7F800000 : f32
      %198 = vector.shape_cast %197 : vector<1x128xf32> to vector<1x128xf32>
      %199 = vector.broadcast %198 : vector<1x128xf32> to vector<16x128xf32>
      %200 = vector.broadcast %cst_76 : f32 to vector<16x128xf32>
      %201 = arith.select %196, %199, %200 : vector<16x128xi1>, vector<16x128xf32>
      %202 = arith.minimumf %193, %201 : vector<16x128xf32>
      %203 = vector.extract_strided_slice %165 {offsets = [0, 512], sizes = [16, 128], strides = [1, 1]} : vector<16x1024xf32> to vector<16x128xf32>
      %204 = vector.broadcast %19 : vector<16x1xf32> to vector<16x128xf32>
      %205 = arith.cmpf oge, %203, %204 : vector<16x128xf32>
      %206 = vector.extract_strided_slice %66 {offsets = [4, 0], sizes = [1, 128], strides = [1, 1]} : vector<8x128xf32> to vector<1x128xf32>
      %cst_77 = arith.constant 0x7F800000 : f32
      %207 = vector.shape_cast %206 : vector<1x128xf32> to vector<1x128xf32>
      %208 = vector.broadcast %207 : vector<1x128xf32> to vector<16x128xf32>
      %209 = vector.broadcast %cst_77 : f32 to vector<16x128xf32>
      %210 = arith.select %205, %208, %209 : vector<16x128xi1>, vector<16x128xf32>
      %211 = arith.minimumf %202, %210 : vector<16x128xf32>
      %212 = vector.extract_strided_slice %165 {offsets = [0, 640], sizes = [16, 128], strides = [1, 1]} : vector<16x1024xf32> to vector<16x128xf32>
      %213 = vector.broadcast %19 : vector<16x1xf32> to vector<16x128xf32>
      %214 = arith.cmpf oge, %212, %213 : vector<16x128xf32>
      %215 = vector.extract_strided_slice %66 {offsets = [5, 0], sizes = [1, 128], strides = [1, 1]} : vector<8x128xf32> to vector<1x128xf32>
      %cst_78 = arith.constant 0x7F800000 : f32
      %216 = vector.shape_cast %215 : vector<1x128xf32> to vector<1x128xf32>
      %217 = vector.broadcast %216 : vector<1x128xf32> to vector<16x128xf32>
      %218 = vector.broadcast %cst_78 : f32 to vector<16x128xf32>
      %219 = arith.select %214, %217, %218 : vector<16x128xi1>, vector<16x128xf32>
      %220 = arith.minimumf %211, %219 : vector<16x128xf32>
      %221 = vector.extract_strided_slice %165 {offsets = [0, 768], sizes = [16, 128], strides = [1, 1]} : vector<16x1024xf32> to vector<16x128xf32>
      %222 = vector.broadcast %19 : vector<16x1xf32> to vector<16x128xf32>
      %223 = arith.cmpf oge, %221, %222 : vector<16x128xf32>
      %224 = vector.extract_strided_slice %66 {offsets = [6, 0], sizes = [1, 128], strides = [1, 1]} : vector<8x128xf32> to vector<1x128xf32>
      %cst_79 = arith.constant 0x7F800000 : f32
      %225 = vector.shape_cast %224 : vector<1x128xf32> to vector<1x128xf32>
      %226 = vector.broadcast %225 : vector<1x128xf32> to vector<16x128xf32>
      %227 = vector.broadcast %cst_79 : f32 to vector<16x128xf32>
      %228 = arith.select %223, %226, %227 : vector<16x128xi1>, vector<16x128xf32>
      %229 = arith.minimumf %220, %228 : vector<16x128xf32>
      %230 = vector.extract_strided_slice %165 {offsets = [0, 896], sizes = [16, 128], strides = [1, 1]} : vector<16x1024xf32> to vector<16x128xf32>
      %231 = vector.broadcast %19 : vector<16x1xf32> to vector<16x128xf32>
      %232 = arith.cmpf oge, %230, %231 : vector<16x128xf32>
      %233 = vector.extract_strided_slice %66 {offsets = [7, 0], sizes = [1, 128], strides = [1, 1]} : vector<8x128xf32> to vector<1x128xf32>
      %cst_80 = arith.constant 0x7F800000 : f32
      %234 = vector.shape_cast %233 : vector<1x128xf32> to vector<1x128xf32>
      %235 = vector.broadcast %234 : vector<1x128xf32> to vector<16x128xf32>
      %236 = vector.broadcast %cst_80 : f32 to vector<16x128xf32>
      %237 = arith.select %232, %235, %236 : vector<16x128xi1>, vector<16x128xf32>
      %238 = arith.minimumf %229, %237 : vector<16x128xf32>
      %c0_81 = arith.constant 0 : index
      %c0_82 = arith.constant 0 : index
      %239 = vector.load %arg10[%c0_81, %c0_82] : memref<16x128xf32, #tpu.memory_space<vmem>>, vector<16x128xf32>
      tpu.vector_store %arg10[%c0_81, %c0_82], %238 {strides = array<i32>} : memref<16x128xf32, #tpu.memory_space<vmem>>, vector<16x128xf32>,
    }
    %c2_i32_39 = arith.constant 2 : i32
    %c0_40 = arith.constant 0 : index
    %c0_41 = arith.constant 0 : index
    %40 = vector.load %arg10[%c0_40, %c0_41] : memref<16x128xf32, #tpu.memory_space<vmem>>, vector<16x128xf32>
    %c0_42 = arith.constant 0 : index
    %c0_43 = arith.constant 0 : index
    %41 = vector.load %arg6[%c0_42, %c0_43] : memref<1x128xf32, #tpu.memory_space<vmem>>, vector<1x128xf32>
    %42 = vector.broadcast %41 : vector<1x128xf32> to vector<16x128xf32>
    %43 = arith.addf %40, %42 : vector<16x128xf32>
    %44 = tpu.iota {dimensions = array<i32: 1>} : vector<16x128xi32>
    %c8_i32 = arith.constant 8 : i32
    %45 = vector.broadcast %c8_i32 : i32 to vector<16x128xi32>
    %46 = arith.cmpi slt, %44, %45 : vector<16x128xi32>
    %cst_44 = arith.constant 0xFF800000 : f32
    %47 = vector.broadcast %cst_44 : f32 to vector<16x128xf32>
    %48 = arith.select %46, %43, %47 : vector<16x128xi1>, vector<16x128xf32>
    %cst_45 = arith.constant dense<0xFF800000> : vector<16xf32>
    %49 = vector.multi_reduction <maximumf>, %48, %cst_45 [1] : vector<16x128xf32> to vector<16xf32>
    %50 = vector.shape_cast %49 : vector<16xf32> to vector<16x1xf32>
    %51 = vector.broadcast %50 : vector<16x1xf32> to vector<16x128xf32>
    %52 = arith.subf %48, %51 : vector<16x128xf32>
    %53 = math.exp %52 : vector<16x128xf32>
    %cst_46 = arith.constant dense<0.000000e+00> : vector<16xf32>
    %54 = vector.multi_reduction <add>, %53, %cst_46 [1] : vector<16x128xf32> to vector<16xf32>
    %55 = vector.shape_cast %54 : vector<16xf32> to vector<16x1xf32>
    %56 = math.log %55 : vector<16x1xf32>
    %57 = vector.broadcast %56 : vector<16x1xf32> to vector<16x128xf32>
    %58 = arith.subf %52, %57 : vector<16x128xf32>
    %cst_47 = arith.constant 0.000000e+00 : f32
    %59 = vector.broadcast %cst_47 : f32 to vector<16x128xf32>
    %60 = arith.select %46, %58, %59 : vector<16x128xi1>, vector<16x128xf32>
    %c0_48 = arith.constant 0 : index
    %c0_49 = arith.constant 0 : index
    %61 = vector.load %arg7[%c0_48, %c0_49] : memref<16x128xf32, #tpu.memory_space<vmem>>, vector<16x128xf32>
    tpu.vector_store %arg7[%c0_48, %c0_49], %60 {strides = array<i32>} : memref<16x128xf32, #tpu.memory_space<vmem>>, vector<16x128xf32>,
    return
  }
  func.func @transform_0(%arg0: i32) -> (i32, i32) {
    %c0_i32 = arith.constant 0 : i32
    %c0_i32_0 = arith.constant 0 : i32
    %c0_i32_1 = arith.constant 0 : i32
    return %c0_i32, %c0_i32_0 : i32, i32
  }
  func.func @transform_1(%arg0: i32) -> (i32, i32) {
    %c0_i32 = arith.constant 0 : i32
    %c0_i32_0 = arith.constant 0 : i32
    %c0_i32_1 = arith.constant 0 : i32
    return %c0_i32, %c0_i32_0 : i32, i32
  }
  func.func @transform_2(%arg0: i32) -> (i32, i32) {
    %c0_i32 = arith.constant 0 : i32
    %c0_i32_0 = arith.constant 0 : i32
    %c0_i32_1 = arith.constant 0 : i32
    return %c0_i32, %c0_i32_0 : i32, i32
  }
  func.func @transform_3(%arg0: i32) -> (i32, i32) {
    %c0_i32 = arith.constant 0 : i32
    %c0_i32_0 = arith.constant 0 : i32
    %c0_i32_1 = arith.constant 0 : i32
    return %c0_i32, %c0_i32_0 : i32, i32
  }
  func.func @transform_4(%arg0: i32) -> (i32, i32) {
    %c0_i32 = arith.constant 0 : i32
    %c0_i32_0 = arith.constant 0 : i32
    %c0_i32_1 = arith.constant 0 : i32
    return %c0_i32, %c0_i32_0 : i32, i32
  }
  func.func @transform_5(%arg0: i32) -> (i32, i32) {
    %c0_i32 = arith.constant 0 : i32
    %c0_i32_0 = arith.constant 0 : i32
    %c0_i32_1 = arith.constant 0 : i32
    return %c0_i32, %c0_i32_0 : i32, i32
  }
  func.func @transform_6(%arg0: i32) -> (i32, i32) {
    %c0_i32 = arith.constant 0 : i32
    %c0_i32_0 = arith.constant 0 : i32
    %c0_i32_1 = arith.constant 0 : i32
    return %c0_i32, %c0_i32_0 : i32, i32
  }
}

</mosaic_0001>

<llo_original>
// kernel: forward.1
$region0: #{forward.1}
  #allocation0 [shape = 'u32[]', space=smem, size = 0x4, offset = 0x4, fixed_abs, tag = 'smem constant byte address 0x4 - core index']
  #allocation1 [shape = 'u32[144,128]{1,0:T(1,128)}', space=vmem, size = 0x12000, scoped, tag = 'internal scratch']
  #allocation2 [shape = 'bf16[16,16]{1,0:T(16,128)(2,1)}', space=vmem, size = 0x1000, scoped, tag = 'scratch operand']
  #allocation3 [shape = 'f32[16,128]{1,0:T(8,128)}', space=vmem, size = 0x2000, scoped, tag = 'scratch operand']
  #allocation4 [shape = 'f32[16,128]{1,0:T(8,128)}', space=vmem, size = 0x2000, scoped, tag = 'scratch operand']
  #allocation5 [shape = 'bf16[16,1024]{1,0:T(16,128)(2,1)}', space=vmem, size = 0x8000, scoped, tag = 'scratch operand']
  %s0 = inlined_call_operand.hbm [shape: bf16[16,16], index: 0, kind: input, shape index: {}]
  %s1 = inlined_call_operand.hbm [shape: f32[16,16], index: 1, kind: input, shape index: {}]
  %s2 = inlined_call_operand.hbm [shape: f32[16,128], index: 2, kind: input, shape index: {}]
  %s3 = inlined_call_operand.vmem [shape: f32[1,128], index: 3, kind: input, shape index: {}]
  %s4 = inlined_call_operand.hbm [shape: f32[128,128], index: 4, kind: input, shape index: {}]
  %s5 = inlined_call_operand.vmem [shape: f32[1,128], index: 5, kind: input, shape index: {}]
  %s6 = inlined_call_operand.vmem [shape: f32[16,128], index: 6, kind: output, shape index: {}]
  %s7 = sld [smem:[#allocation0]]
  $region64: #{forward.1} parent=0
    _
  %s9 = ssub.s32 1, %s7
  %s10 = scalar_select 0, %s9, %s7
  $region1: #{forward.1} parent=0
    #allocation6 [shape = 'u8[4096]{0}', space=vmem, size = 0x1000, scoped, tag = 'input window, operand 0, single buffered']
    #allocation7 [shape = 's32[1]{0}', space=sflag, size = 0x4, scoped, tag = 'scoped memory for forward.1']
    #allocation8 [shape = 'u8[8192]{0}', space=vmem, size = 0x2000, scoped, tag = 'input window, operand 1, single buffered']
    #allocation9 [shape = 's32[1]{0}', space=sflag, size = 0x4, scoped, tag = 'scoped memory for forward.1']
    #allocation10 [shape = 'u8[8192]{0}', space=vmem, size = 0x2000, scoped, tag = 'input window, operand 2, single buffered']
    #allocation11 [shape = 'u8[65536]{0}', space=vmem, size = 0x10000, scoped, tag = 'input window, operand 4, single buffered']
    #allocation12 [shape = 's32[1]{0}', space=sflag, size = 0x4, scoped, tag = 'scoped memory for forward.1']
    %11 = vsyncpa [#allocation7], 0
    %12 = vsyncpa [#allocation9], 0
    %13 = vsyncpa [#allocation12], 0
    // Predicated region
    $region2: #{forward.1} parent=1 // pred_check
      _
    $region3: #{forward.1} parent=1 // pred_check_branch
      %15 = sbr.rel (0) target = $region5
    $region4: #{forward.1} parent=1 // pred_region
      %s17 = ssub.s32 128, 128
      %18 = vsyncadd [#allocation7], %s17
      %s19 = sshll.u32 [#allocation6], 4
      %s20 = int_to_ptr.vmem [resolvable:$true] %s19
      %25 = dma.hbm_to_vmem [thread:$0]  %s0, 128, %s20, [#allocation7], 64, 64, 4
    $region5: #{forward.1} parent=1 // pred_fallthru
      _
    // Predicated region
    $region6: #{forward.1} parent=1 // pred_check
      _
    $region7: #{forward.1} parent=1 // pred_check_branch
      %27 = sbr.rel (0) target = $region9
    $region8: #{forward.1} parent=1 // pred_region
      %s29 = ssub.s32 256, 256
      %30 = vsyncadd [#allocation9], %s29
      %s31 = sshll.u32 [#allocation8], 4
      %s32 = int_to_ptr.vmem [resolvable:$true] %s31
      %37 = dma.hbm_to_vmem [thread:$0]  %s1, 256, %s32, [#allocation9], 128, 128, 8
    $region9: #{forward.1} parent=1 // pred_fallthru
      _
    // Predicated region
    $region10: #{forward.1} parent=1 // pred_check
      _
    $region11: #{forward.1} parent=1 // pred_check_branch
      %39 = sbr.rel (0) target = $region13
    $region12: #{forward.1} parent=1 // pred_region
      %s41 = ssub.s32 256, 256
      %42 = vsyncadd [#allocation9], %s41
      %s43 = sshll.u32 [#allocation10], 4
      %s44 = int_to_ptr.vmem [resolvable:$true] %s43
      %49 = dma.hbm_to_vmem [thread:$0]  %s2, 256, %s44, [#allocation9], 128, 128, 8
    $region13: #{forward.1} parent=1 // pred_fallthru
      _
    // Predicated region
    $region14: #{forward.1} parent=1 // pred_check
      _
    $region15: #{forward.1} parent=1 // pred_check_branch
      %51 = sbr.rel (0) target = $region17
    $region16: #{forward.1} parent=1 // pred_region
      _
    $region17: #{forward.1} parent=1 // pred_fallthru
      _
    // Predicated region
    $region18: #{forward.1} parent=1 // pred_check
      _
    $region19: #{forward.1} parent=1 // pred_check_branch
      %53 = sbr.rel (0) target = $region21
    $region20: #{forward.1} parent=1 // pred_region
      %s55 = ssub.s32 2048, 2048
      %56 = vsyncadd [#allocation12], %s55
      %s57 = sshll.u32 [#allocation11], 4
      %s58 = int_to_ptr.vmem [resolvable:$true] %s57
      %63 = dma.hbm_to_vmem [thread:$0]  %s4, 2048, %s58, [#allocation12], 128, 128, 8
    $region21: #{forward.1} parent=1 // pred_fallthru
      _
    // Predicated region
    $region22: #{forward.1} parent=1 // pred_check
      _
    $region23: #{forward.1} parent=1 // pred_check_branch
      %65 = sbr.rel (0) target = $region25
    $region24: #{forward.1} parent=1 // pred_region
      _
    $region25: #{forward.1} parent=1 // pred_fallthru
      _
    // Predicated region
    $region26: #{forward.1} parent=1 // pred_check
      _
    $region27: #{forward.1} parent=1 // pred_check_branch
      %67 = sbr.rel (0) target = $region29
    $region28: #{forward.1} parent=1 // pred_region
      %68 = dma.done [#allocation7], 128
    $region29: #{forward.1} parent=1 // pred_fallthru
      _
    // Predicated region
    $region30: #{forward.1} parent=1 // pred_check
      _
    $region31: #{forward.1} parent=1 // pred_check_branch
      %70 = sbr.rel (0) target = $region33
    $region32: #{forward.1} parent=1 // pred_region
      %71 = dma.done [#allocation9], 256
    $region33: #{forward.1} parent=1 // pred_fallthru
      _
    // Predicated region
    $region34: #{forward.1} parent=1 // pred_check
      _
    $region35: #{forward.1} parent=1 // pred_check_branch
      %73 = sbr.rel (0) target = $region37
    $region36: #{forward.1} parent=1 // pred_region
      %74 = dma.done [#allocation9], 256
    $region37: #{forward.1} parent=1 // pred_fallthru
      _
    // Predicated region
    $region38: #{forward.1} parent=1 // pred_check
      _
    $region39: #{forward.1} parent=1 // pred_check_branch
      %76 = sbr.rel (0) target = $region41
    $region40: #{forward.1} parent=1 // pred_region
      %77 = dma.done [#allocation12], 2048
    $region41: #{forward.1} parent=1 // pred_fallthru
      _
    %v83 = vlaneseq
    %v84 = vshrl.u32 %v83, 7
    %v85 = vadd.s32 %v84, 8
    %v86 = vlaneseq
    %v87 = vand.u32 %v86, 127
    %vm88 = vcmp.eq.s32.totalorder %v84, %v87
    %vm89 = vcmp.eq.s32.totalorder %v85, %v87
    %v90 = vld [vmem:[#allocation6] sm:$0xf]
    %v91 = vld [vmem:[#allocation6 + $0x4] sm:$0xf]
    %vm92 = vmpackc.low %vm88, %vm88
    %vm93 = vmpackc.low %vm89, %vm89
    %v94 = vsel %vm92, 1065369472, %v90
    %v95 = vsel %vm93, 1065369472, %v91
    %v98 = vunpack.c.l.b16 %v94
    %v99 = vunpack.c.l.b16 %v95
    %v100 = vpack.c.b16 %v99, %v98
    %vm102 = vcmask 130048
    %103 = vst.msk [vmem:[#allocation2] sm:$0xff] %vm102, %v100
    %v104 = vld [vmem:[#allocation2] sm:$0xff]
    %v105 = vunpack.c.l.bf16 %v104
    %v106 = vunpack.c.h.bf16 %v104
    %v107 = vsel %vm102, %v105, 0.0
    %108 = vadd.xlane.f32.xlu0 %v107
    %v109 = vpop.xlane.xlu0 %108
    %v110 = vsel %vm102, %v106, 0.0
    %111 = vadd.xlane.f32.xlu0 %v110
    %v112 = vpop.xlane.xlu0 %111
    %v113 = vsub.f32 %v109, 1.0
    %v114 = vsub.f32 %v112, 1.0
    %v115 = vmul.f32 %v113, 0.5
    %v116 = vmul.f32 %v114, 0.5
    %v117 = vfloor.f32 %v115
    %v118 = vfloor.f32 %v116
    %v119 = vadd.f32 %v117, 1.0
    %v120 = vadd.f32 %v118, 1.0
    %v121 = vadd.f32 %v119, 511.0
    %v122 = vadd.f32 %v120, 511.0
    %v123 = vld [vmem:[#allocation8] sm:$0xff]
    %v124 = vld [vmem:[#allocation8 + $0x8] sm:$0xff]
    %v125 = vld [vmem:[#allocation10] sm:$0xff]
    %v126 = vld [vmem:[#allocation10 + $0x8] sm:$0xff]
    %v128 = vsel %vm102, %v123, 0
    %v131 = vsel %vm102, %v124, 0
    %133 = vmatprep.subr.mxu0 0.0
    %134 = vmatpush1.msra.mxu0 %v125
    %135 = vmatprep.subr.mxu0 0.0
    %136 = vmatpush1.msra.mxu0 %v126
    %137 = vmatprep.subr.mxu0 0.0
    %138 = vmatpush1.msra.mxu0 0.0
    %139 = vmatprep.subr.mxu0 0.0
    %140 = vmatpush1.msra.mxu0 0.0
    %141 = vmatprep.subr.mxu0 0.0
    %142 = vmatpush1.msra.mxu0 0.0
    %143 = vmatprep.subr.mxu0 0.0
    %144 = vmatpush1.msra.mxu0 0.0
    %145 = vmatprep.subr.mxu0 0.0
    %146 = vmatpush1.msra.mxu0 0.0
    %147 = vmatprep.subr.mxu0 0.0
    %148 = vmatpush1.msra.mxu0 0.0
    %149 = vmatprep.subr.mxu0 0.0
    %150 = vmatpush1.msra.mxu0 0.0
    %151 = vmatprep.subr.mxu0 0.0
    %152 = vmatpush1.msra.mxu0 0.0
    %153 = vmatprep.subr.mxu0 0.0
    %154 = vmatpush1.msra.mxu0 0.0
    %155 = vmatprep.subr.mxu0 0.0
    %156 = vmatpush1.msra.mxu0 0.0
    %157 = vmatprep.subr.mxu0 0.0
    %158 = vmatpush1.msra.mxu0 0.0
    %159 = vmatprep.subr.mxu0 0.0
    %160 = vmatpush1.msra.mxu0 0.0
    %161 = vmatprep.subr.mxu0 0.0
    %162 = vmatpush1.msra.mxu0 0.0
    %163 = vmatprep.subr.mxu0 0.0
    %164 = vmatpush1.msra.mxu0 0.0
    %165 = vmatprep.subr.mxu0 0.0
    %166 = vmatpush1.msra.mxu0 0.0
    %167 = vmatprep.subr.mxu0 0.0
    %168 = vmatpush1.msra.mxu0 0.0
    %169 = vmatprep.subr.mxu0 0.0
    %170 = vmatpush1.msra.mxu0 0.0
    %171 = vmatprep.subr.mxu0 0.0
    %172 = vmatpush1.msra.mxu0 0.0
    %173 = vmatprep.subr.mxu0 0.0
    %174 = vmatpush1.msra.mxu0 0.0
    %175 = vmatprep.subr.mxu0 0.0
    %176 = vmatpush1.msra.mxu0 0.0
    %177 = vmatprep.subr.mxu0 0.0
    %178 = vmatpush1.msra.mxu0 0.0
    %179 = vmatprep.subr.mxu0 0.0
    %180 = vmatpush1.msra.mxu0 0.0
    %181 = vmatprep.subr.mxu0 0.0
    %182 = vmatpush1.msra.mxu0 0.0
    %183 = vmatprep.subr.mxu0 0.0
    %184 = vmatpush1.msra.mxu0 0.0
    %185 = vmatprep.subr.mxu0 0.0
    %186 = vmatpush1.msra.mxu0 0.0
    %187 = vmatprep.subr.mxu0 0.0
    %188 = vmatpush1.msra.mxu0 0.0
    %189 = vmatprep.subr.mxu0 0.0
    %190 = vmatpush1.msra.mxu0 0.0
    %191 = vmatprep.subr.mxu0 0.0
    %192 = vmatpush1.msra.mxu0 0.0
    %193 = vmatprep.subr.mxu0 0.0
    %194 = vmatpush1.msra.mxu0 0.0
    %195 = vmatprep.subr.mxu0 0.0
    %196 = vmatpush1.msra.mxu0 0.0
    %197 = vmatprep.mubr.f32.mxu0 0.0
    %198 = vmatmul.mubr.f32.gmra.mrb[0].mxu0 %v128
    %v199 = vpop.f32.mrb[0].mxu0
    %v200 = vadd.f32 0.0, %v199
    %v201 = vpop.f32.mrb[0].mxu0
    %202 = vmatprep.mubr.f32.mxu0 0.0
    %203 = vmatmul.mubr.f32.gmra.mrb[0].mxu0 %v131
    %v204 = vpop.f32.mrb[0].mxu0
    %v205 = vadd.f32 0.0, %v204
    %v206 = vpop.f32.mrb[0].mxu0
    %207 = vdwg.mxu0
    %208 = vst [vmem:[#allocation3] sm:$0xff] %v200
    %209 = vst [vmem:[#allocation3 + $0x8] sm:$0xff] %v205
    %210 = vst [vmem:[#allocation4] sm:$0xff] inf
    %211 = vst [vmem:[#allocation4 + $0x8] sm:$0xff] inf
    loop: start=0, step=1, limit=2
    $region42: #{forward.1} parent=1 // loop_pre_header
      _
    $region43: #{forward.1} parent=1 // loop_header
      %s213 = sphi 0, %s217
      %p214 = scmp.ge.s32.totalorder %s213, 2
    $region44: #{forward.1} parent=1 // loop_header_branch
      %216 = sbr.rel (%p214) target = $region48
    $region45: #{forward.1} parent=1 // loop_body
      %s218 = smul.u32 %s213, 8
      %v219 = vld [vmem:[#allocation3] sm:$0xff]
      %v220 = vld [vmem:[#allocation3 + $0x8] sm:$0xff]
      %s221 = scalar_lea.vmem [#allocation3], %s218
      %v222 = vld [vmem:[%s221] sm:$0xff]
      %v223 = vlaneseq
      %v224 = vshrl.u32 %v223, 7
      %v225 = vsub.s32 0, %v224
      %v226 = vrot.slane %v222, %v225
      %vm227 = vcmp.le.f32.partialorder %v219, %v226
      %vm228 = vcmp.le.f32.partialorder %v220, %v226
      %v229 = vsel %vm227, 1, 0
      %v230 = vsel %vm228, 1, 0
      %v231 = vcvt.s32.f32 %v229
      %v232 = vcvt.s32.f32 %v230
      %v233 = vpack.c.bf16 %v232, %v231
      %v234 = vstv %s218
      %vm235 = vcmp.eq.s32.totalorder %v84, %v234
      %vm236 = vcmp.eq.s32.totalorder %v85, %v234
      %vm237 = vmpackc.low %vm235, %vm235
      %vm238 = vmpackc.low %vm236, %vm236
      %v239 = vsel %vm237, 65537, 0
      %v240 = vsel %vm238, 65537, 0
      %v241 = vunpack.c.l.b16 %v239
      %v242 = vunpack.c.l.b16 %v240
      %v243 = vpack.c.b16 %v242, %v241
      %vm244 = vcmp.ne.s16.totalorder %v243, 0
      %v245 = vsel %vm244, 1140868096, %v233
      %246 = vst [vmem:[#allocation5] sm:$0xff] %v245
      %v247 = vlaneseq
      %v248 = vshrl.u32 %v247, 7
      %v249 = vsub.s32 1, %v248
      %v250 = vrot.slane %v222, %v249
      %vm251 = vcmp.le.f32.partialorder %v219, %v250
      %vm252 = vcmp.le.f32.partialorder %v220, %v250
      %v253 = vsel %vm251, 1, 0
      %v254 = vsel %vm252, 1, 0
      %v255 = vcvt.s32.f32 %v253
      %v256 = vcvt.s32.f32 %v254
      %v257 = vpack.c.bf16 %v256, %v255
      %s258 = sadd.s32 %s218, 1
      %v259 = vstv %s258
      %vm260 = vcmp.eq.s32.totalorder %v84, %v259
      %vm261 = vcmp.eq.s32.totalorder %v85, %v259
      %vm262 = vmpackc.low %vm260, %vm260
      %vm263 = vmpackc.low %vm261, %vm261
      %v264 = vsel %vm262, 65537, 0
      %v265 = vsel %vm263, 65537, 0
      %v266 = vunpack.c.l.b16 %v264
      %v267 = vunpack.c.l.b16 %v265
      %v268 = vpack.c.b16 %v267, %v266
      %vm269 = vcmp.ne.s16.totalorder %v268, 0
      %v270 = vsel %vm269, 1140868096, %v257
      %271 = vst [vmem:[#allocation5 + $0x8] sm:$0xff] %v270
      %v272 = vlaneseq
      %v273 = vshrl.u32 %v272, 7
      %v274 = vsub.s32 2, %v273
      %v275 = vrot.slane %v222, %v274
      %vm276 = vcmp.le.f32.partialorder %v219, %v275
      %vm277 = vcmp.le.f32.partialorder %v220, %v275
      %v278 = vsel %vm276, 1, 0
      %v279 = vsel %vm277, 1, 0
      %v280 = vcvt.s32.f32 %v278
      %v281 = vcvt.s32.f32 %v279
      %v282 = vpack.c.bf16 %v281, %v280
      %s283 = sadd.s32 %s218, 2
      %v284 = vstv %s283
      %vm285 = vcmp.eq.s32.totalorder %v84, %v284
      %vm286 = vcmp.eq.s32.totalorder %v85, %v284
      %vm287 = vmpackc.low %vm285, %vm285
      %vm288 = vmpackc.low %vm286, %vm286
      %v289 = vsel %vm287, 65537, 0
      %v290 = vsel %vm288, 65537, 0
      %v291 = vunpack.c.l.b16 %v289
      %v292 = vunpack.c.l.b16 %v290
      %v293 = vpack.c.b16 %v292, %v291
      %vm294 = vcmp.ne.s16.totalorder %v293, 0
      %v295 = vsel %vm294, 1140868096, %v282
      %296 = vst [vmem:[#allocation5 + $0x10] sm:$0xff] %v295
      %v297 = vlaneseq
      %v298 = vshrl.u32 %v297, 7
      %v299 = vsub.s32 3, %v298
      %v300 = vrot.slane %v222, %v299
      %vm301 = vcmp.le.f32.partialorder %v219, %v300
      %vm302 = vcmp.le.f32.partialorder %v220, %v300
      %v303 = vsel %vm301, 1, 0
      %v304 = vsel %vm302, 1, 0
      %v305 = vcvt.s32.f32 %v303
      %v306 = vcvt.s32.f32 %v304
      %v307 = vpack.c.bf16 %v306, %v305
      %s308 = sadd.s32 %s218, 3
      %v309 = vstv %s308
      %vm310 = vcmp.eq.s32.totalorder %v84, %v309
      %vm311 = vcmp.eq.s32.totalorder %v85, %v309
      %vm312 = vmpackc.low %vm310, %vm310
      %vm313 = vmpackc.low %vm311, %vm311
      %v314 = vsel %vm312, 65537, 0
      %v315 = vsel %vm313, 65537, 0
      %v316 = vunpack.c.l.b16 %v314
      %v317 = vunpack.c.l.b16 %v315
      %v318 = vpack.c.b16 %v317, %v316
      %vm319 = vcmp.ne.s16.totalorder %v318, 0
      %v320 = vsel %vm319, 1140868096, %v307
      %321 = vst [vmem:[#allocation5 + $0x18] sm:$0xff] %v320
      %v322 = vlaneseq
      %v323 = vshrl.u32 %v322, 7
      %v324 = vsub.s32 4, %v323
      %v325 = vrot.slane %v222, %v324
      %vm326 = vcmp.le.f32.partialorder %v219, %v325
      %vm327 = vcmp.le.f32.partialorder %v220, %v325
      %v328 = vsel %vm326, 1, 0
      %v329 = vsel %vm327, 1, 0
      %v330 = vcvt.s32.f32 %v328
      %v331 = vcvt.s32.f32 %v329
      %v332 = vpack.c.bf16 %v331, %v330
      %s333 = sadd.s32 %s218, 4
      %v334 = vstv %s333
      %vm335 = vcmp.eq.s32.totalorder %v84, %v334
      %vm336 = vcmp.eq.s32.totalorder %v85, %v334
      %vm337 = vmpackc.low %vm335, %vm335
      %vm338 = vmpackc.low %vm336, %vm336
      %v339 = vsel %vm337, 65537, 0
      %v340 = vsel %vm338, 65537, 0
      %v341 = vunpack.c.l.b16 %v339
      %v342 = vunpack.c.l.b16 %v340
      %v343 = vpack.c.b16 %v342, %v341
      %vm344 = vcmp.ne.s16.totalorder %v343, 0
      %v345 = vsel %vm344, 1140868096, %v332
      %346 = vst [vmem:[#allocation5 + $0x20] sm:$0xff] %v345
      %v347 = vlaneseq
      %v348 = vshrl.u32 %v347, 7
      %v349 = vsub.s32 5, %v348
      %v350 = vrot.slane %v222, %v349
      %vm351 = vcmp.le.f32.partialorder %v219, %v350
      %vm352 = vcmp.le.f32.partialorder %v220, %v350
      %v353 = vsel %vm351, 1, 0
      %v354 = vsel %vm352, 1, 0
      %v355 = vcvt.s32.f32 %v353
      %v356 = vcvt.s32.f32 %v354
      %v357 = vpack.c.bf16 %v356, %v355
      %s358 = sadd.s32 %s218, 5
      %v359 = vstv %s358
      %vm360 = vcmp.eq.s32.totalorder %v84, %v359
      %vm361 = vcmp.eq.s32.totalorder %v85, %v359
      %vm362 = vmpackc.low %vm360, %vm360
      %vm363 = vmpackc.low %vm361, %vm361
      %v364 = vsel %vm362, 65537, 0
      %v365 = vsel %vm363, 65537, 0
      %v366 = vunpack.c.l.b16 %v364
      %v367 = vunpack.c.l.b16 %v365
      %v368 = vpack.c.b16 %v367, %v366
      %vm369 = vcmp.ne.s16.totalorder %v368, 0
      %v370 = vsel %vm369, 1140868096, %v357
      %371 = vst [vmem:[#allocation5 + $0x28] sm:$0xff] %v370
      %v372 = vlaneseq
      %v373 = vshrl.u32 %v372, 7
      %v374 = vsub.s32 6, %v373
      %v375 = vrot.slane %v222, %v374
      %vm376 = vcmp.le.f32.partialorder %v219, %v375
      %vm377 = vcmp.le.f32.partialorder %v220, %v375
      %v378 = vsel %vm376, 1, 0
      %v379 = vsel %vm377, 1, 0
      %v380 = vcvt.s32.f32 %v378
      %v381 = vcvt.s32.f32 %v379
      %v382 = vpack.c.bf16 %v381, %v380
      %s383 = sadd.s32 %s218, 6
      %v384 = vstv %s383
      %vm385 = vcmp.eq.s32.totalorder %v84, %v384
      %vm386 = vcmp.eq.s32.totalorder %v85, %v384
      %vm387 = vmpackc.low %vm385, %vm385
      %vm388 = vmpackc.low %vm386, %vm386
      %v389 = vsel %vm387, 65537, 0
      %v390 = vsel %vm388, 65537, 0
      %v391 = vunpack.c.l.b16 %v389
      %v392 = vunpack.c.l.b16 %v390
      %v393 = vpack.c.b16 %v392, %v391
      %vm394 = vcmp.ne.s16.totalorder %v393, 0
      %v395 = vsel %vm394, 1140868096, %v382
      %396 = vst [vmem:[#allocation5 + $0x30] sm:$0xff] %v395
      %v397 = vlaneseq
      %v398 = vshrl.u32 %v397, 7
      %v399 = vsub.s32 7, %v398
      %v400 = vrot.slane %v222, %v399
      %vm401 = vcmp.le.f32.partialorder %v219, %v400
      %vm402 = vcmp.le.f32.partialorder %v220, %v400
      %v403 = vsel %vm401, 1, 0
      %v404 = vsel %vm402, 1, 0
      %v405 = vcvt.s32.f32 %v403
      %v406 = vcvt.s32.f32 %v404
      %v407 = vpack.c.bf16 %v406, %v405
      %s408 = sadd.s32 %s218, 7
      %v409 = vstv %s408
      %vm410 = vcmp.eq.s32.totalorder %v84, %v409
      %vm411 = vcmp.eq.s32.totalorder %v85, %v409
      %vm412 = vmpackc.low %vm410, %vm410
      %vm413 = vmpackc.low %vm411, %vm411
      %v414 = vsel %vm412, 65537, 0
      %v415 = vsel %vm413, 65537, 0
      %v416 = vunpack.c.l.b16 %v414
      %v417 = vunpack.c.l.b16 %v415
      %v418 = vpack.c.b16 %v417, %v416
      %vm419 = vcmp.ne.s16.totalorder %v418, 0
      %v420 = vsel %vm419, 1140868096, %v407
      %421 = vst [vmem:[#allocation5 + $0x38] sm:$0xff] %v420
      %v422 = vld [vmem:[#allocation2] sm:$0xff]
      %v423 = vld [vmem:[#allocation5] sm:$0xff]
      %v424 = vld [vmem:[#allocation5 + $0x8] sm:$0xff]
      %v425 = vld [vmem:[#allocation5 + $0x10] sm:$0xff]
      %v426 = vld [vmem:[#allocation5 + $0x18] sm:$0xff]
      %v427 = vld [vmem:[#allocation5 + $0x20] sm:$0xff]
      %v428 = vld [vmem:[#allocation5 + $0x28] sm:$0xff]
      %v429 = vld [vmem:[#allocation5 + $0x30] sm:$0xff]
      %v430 = vld [vmem:[#allocation5 + $0x38] sm:$0xff]
      %v432 = vsel %vm102, %v422, 0
      %434 = vmatprep.subr.bf16.mxu0 %v424
      %435 = vmatpush1.bf16.msra.mxu0 %v423
      %436 = vmatprep.subr.bf16.mxu0 0
      %437 = vmatpush1.bf16.msra.mxu0 0
      %438 = vmatprep.subr.bf16.mxu0 0
      %439 = vmatpush1.bf16.msra.mxu0 0
      %440 = vmatprep.subr.bf16.mxu0 0
      %441 = vmatpush1.bf16.msra.mxu0 0
      %442 = vmatprep.subr.bf16.mxu0 0
      %443 = vmatpush1.bf16.msra.mxu0 0
      %444 = vmatprep.subr.bf16.mxu0 0
      %445 = vmatpush1.bf16.msra.mxu0 0
      %446 = vmatprep.subr.bf16.mxu0 0
      %447 = vmatpush1.bf16.msra.mxu0 0
      %448 = vmatprep.subr.bf16.mxu0 0
      %449 = vmatpush1.bf16.msra.mxu0 0
      %450 = vmatprep.subr.bf16.mxu0 0
      %451 = vmatpush1.bf16.msra.mxu0 0
      %452 = vmatprep.subr.bf16.mxu0 0
      %453 = vmatpush1.bf16.msra.mxu0 0
      %454 = vmatprep.subr.bf16.mxu0 0
      %455 = vmatpush1.bf16.msra.mxu0 0
      %456 = vmatprep.subr.bf16.mxu0 0
      %457 = vmatpush1.bf16.msra.mxu0 0
      %458 = vmatprep.subr.bf16.mxu0 0
      %459 = vmatpush1.bf16.msra.mxu0 0
      %460 = vmatprep.subr.bf16.mxu0 0
      %461 = vmatpush1.bf16.msra.mxu0 0
      %462 = vmatprep.subr.bf16.mxu0 0
      %463 = vmatpush1.bf16.msra.mxu0 0
      %464 = vmatprep.subr.bf16.mxu0 0
      %465 = vmatpush1.bf16.msra.mxu0 0
      %466 = vmatprep.mubr.bf16.mxu0 0
      %467 = vmatmul.mubr.bf16.gmra.mrb[0].mxu0 %v432
      %v468 = vpop.f32.mrb[0].mxu0
      %v469 = vadd.f32 0.0, %v468
      %v470 = vpop.f32.mrb[0].mxu0
      %v471 = vadd.f32 0.0, %v470
      %v472 = vpop.f32.mrb[0].mxu0
      %v473 = vadd.f32 0.0, %v472
      %v474 = vpop.f32.mrb[0].mxu0
      %v475 = vadd.f32 0.0, %v474
      %476 = vdwg.mxu0
      %477 = vmatprep.subr.bf16.mxu0 %v426
      %478 = vmatpush1.bf16.msra.mxu0 %v425
      %479 = vmatprep.subr.bf16.mxu0 0
      %480 = vmatpush1.bf16.msra.mxu0 0
      %481 = vmatprep.subr.bf16.mxu0 0
      %482 = vmatpush1.bf16.msra.mxu0 0
      %483 = vmatprep.subr.bf16.mxu0 0
      %484 = vmatpush1.bf16.msra.mxu0 0
      %485 = vmatprep.subr.bf16.mxu0 0
      %486 = vmatpush1.bf16.msra.mxu0 0
      %487 = vmatprep.subr.bf16.mxu0 0
      %488 = vmatpush1.bf16.msra.mxu0 0
      %489 = vmatprep.subr.bf16.mxu0 0
      %490 = vmatpush1.bf16.msra.mxu0 0
      %491 = vmatprep.subr.bf16.mxu0 0
      %492 = vmatpush1.bf16.msra.mxu0 0
      %493 = vmatprep.subr.bf16.mxu0 0
      %494 = vmatpush1.bf16.msra.mxu0 0
      %495 = vmatprep.subr.bf16.mxu0 0
      %496 = vmatpush1.bf16.msra.mxu0 0
      %497 = vmatprep.subr.bf16.mxu0 0
      %498 = vmatpush1.bf16.msra.mxu0 0
      %499 = vmatprep.subr.bf16.mxu0 0
      %500 = vmatpush1.bf16.msra.mxu0 0
      %501 = vmatprep.subr.bf16.mxu0 0
      %502 = vmatpush1.bf16.msra.mxu0 0
      %503 = vmatprep.subr.bf16.mxu0 0
      %504 = vmatpush1.bf16.msra.mxu0 0
      %505 = vmatprep.subr.bf16.mxu0 0
      %506 = vmatpush1.bf16.msra.mxu0 0
      %507 = vmatprep.subr.bf16.mxu0 0
      %508 = vmatpush1.bf16.msra.mxu0 0
      %509 = vmatprep.mubr.bf16.mxu0 0
      %510 = vmatmul.mubr.bf16.gmra.mrb[0].mxu0 %v432
      %v511 = vpop.f32.mrb[0].mxu0
      %v512 = vadd.f32 0.0, %v511
      %v513 = vpop.f32.mrb[0].mxu0
      %v514 = vadd.f32 0.0, %v513
      %v515 = vpop.f32.mrb[0].mxu0
      %v516 = vadd.f32 0.0, %v515
      %v517 = vpop.f32.mrb[0].mxu0
      %v518 = vadd.f32 0.0, %v517
      %519 = vdwg.mxu0
      %520 = vmatprep.subr.bf16.mxu0 %v428
      %521 = vmatpush1.bf16.msra.mxu0 %v427
      %522 = vmatprep.subr.bf16.mxu0 0
      %523 = vmatpush1.bf16.msra.mxu0 0
      %524 = vmatprep.subr.bf16.mxu0 0
      %525 = vmatpush1.bf16.msra.mxu0 0
      %526 = vmatprep.subr.bf16.mxu0 0
      %527 = vmatpush1.bf16.msra.mxu0 0
      %528 = vmatprep.subr.bf16.mxu0 0
      %529 = vmatpush1.bf16.msra.mxu0 0
      %530 = vmatprep.subr.bf16.mxu0 0
      %531 = vmatpush1.bf16.msra.mxu0 0
      %532 = vmatprep.subr.bf16.mxu0 0
      %533 = vmatpush1.bf16.msra.mxu0 0
      %534 = vmatprep.subr.bf16.mxu0 0
      %535 = vmatpush1.bf16.msra.mxu0 0
      %536 = vmatprep.subr.bf16.mxu0 0
      %537 = vmatpush1.bf16.msra.mxu0 0
      %538 = vmatprep.subr.bf16.mxu0 0
      %539 = vmatpush1.bf16.msra.mxu0 0
      %540 = vmatprep.subr.bf16.mxu0 0
      %541 = vmatpush1.bf16.msra.mxu0 0
      %542 = vmatprep.subr.bf16.mxu0 0
      %543 = vmatpush1.bf16.msra.mxu0 0
      %544 = vmatprep.subr.bf16.mxu0 0
      %545 = vmatpush1.bf16.msra.mxu0 0
      %546 = vmatprep.subr.bf16.mxu0 0
      %547 = vmatpush1.bf16.msra.mxu0 0
      %548 = vmatprep.subr.bf16.mxu0 0
      %549 = vmatpush1.bf16.msra.mxu0 0
      %550 = vmatprep.subr.bf16.mxu0 0
      %551 = vmatpush1.bf16.msra.mxu0 0
      %552 = vmatprep.mubr.bf16.mxu0 0
      %553 = vmatmul.mubr.bf16.gmra.mrb[0].mxu0 %v432
      %v554 = vpop.f32.mrb[0].mxu0
      %v555 = vadd.f32 0.0, %v554
      %v556 = vpop.f32.mrb[0].mxu0
      %v557 = vadd.f32 0.0, %v556
      %v558 = vpop.f32.mrb[0].mxu0
      %v559 = vadd.f32 0.0, %v558
      %v560 = vpop.f32.mrb[0].mxu0
      %v561 = vadd.f32 0.0, %v560
      %562 = vdwg.mxu0
      %563 = vmatprep.subr.bf16.mxu0 %v430
      %564 = vmatpush1.bf16.msra.mxu0 %v429
      %565 = vmatprep.subr.bf16.mxu0 0
      %566 = vmatpush1.bf16.msra.mxu0 0
      %567 = vmatprep.subr.bf16.mxu0 0
      %568 = vmatpush1.bf16.msra.mxu0 0
      %569 = vmatprep.subr.bf16.mxu0 0
      %570 = vmatpush1.bf16.msra.mxu0 0
      %571 = vmatprep.subr.bf16.mxu0 0
      %572 = vmatpush1.bf16.msra.mxu0 0
      %573 = vmatprep.subr.bf16.mxu0 0
      %574 = vmatpush1.bf16.msra.mxu0 0
      %575 = vmatprep.subr.bf16.mxu0 0
      %576 = vmatpush1.bf16.msra.mxu0 0
      %577 = vmatprep.subr.bf16.mxu0 0
      %578 = vmatpush1.bf16.msra.mxu0 0
      %579 = vmatprep.subr.bf16.mxu0 0
      %580 = vmatpush1.bf16.msra.mxu0 0
      %581 = vmatprep.subr.bf16.mxu0 0
      %582 = vmatpush1.bf16.msra.mxu0 0
      %583 = vmatprep.subr.bf16.mxu0 0
      %584 = vmatpush1.bf16.msra.mxu0 0
      %585 = vmatprep.subr.bf16.mxu0 0
      %586 = vmatpush1.bf16.msra.mxu0 0
      %587 = vmatprep.subr.bf16.mxu0 0
      %588 = vmatpush1.bf16.msra.mxu0 0
      %589 = vmatprep.subr.bf16.mxu0 0
      %590 = vmatpush1.bf16.msra.mxu0 0
      %591 = vmatprep.subr.bf16.mxu0 0
      %592 = vmatpush1.bf16.msra.mxu0 0
      %593 = vmatprep.subr.bf16.mxu0 0
      %594 = vmatpush1.bf16.msra.mxu0 0
      %595 = vmatprep.mubr.bf16.mxu0 0
      %596 = vmatmul.mubr.bf16.gmra.mrb[0].mxu0 %v432
      %v597 = vpop.f32.mrb[0].mxu0
      %v598 = vadd.f32 0.0, %v597
      %v599 = vpop.f32.mrb[0].mxu0
      %v600 = vadd.f32 0.0, %v599
      %v601 = vpop.f32.mrb[0].mxu0
      %v602 = vadd.f32 0.0, %v601
      %v603 = vpop.f32.mrb[0].mxu0
      %v604 = vadd.f32 0.0, %v603
      %605 = vdwg.mxu0
      %v606 = vld [vmem:[#allocation4] sm:$0xff]
      %v607 = vld [vmem:[#allocation4 + $0x8] sm:$0xff]
      %vm608 = vcmp.ge.f32.partialorder %v469, %v121
      %vm609 = vcmp.ge.f32.partialorder %v473, %v122
      %v610 = vsel %vm608, %v226, inf
      %v611 = vsel %vm609, %v226, inf
      %v612 = vmin.f32 %v606, %v610
      %v613 = vmin.f32 %v607, %v611
      %vm614 = vcmp.ge.f32.partialorder %v471, %v121
      %vm615 = vcmp.ge.f32.partialorder %v475, %v122
      %v616 = vsel %vm614, %v250, inf
      %v617 = vsel %vm615, %v250, inf
      %v618 = vmin.f32 %v612, %v616
      %v619 = vmin.f32 %v613, %v617
      %vm620 = vcmp.ge.f32.partialorder %v512, %v121
      %vm621 = vcmp.ge.f32.partialorder %v516, %v122
      %v622 = vsel %vm620, %v275, inf
      %v623 = vsel %vm621, %v275, inf
      %v624 = vmin.f32 %v618, %v622
      %v625 = vmin.f32 %v619, %v623
      %vm626 = vcmp.ge.f32.partialorder %v514, %v121
      %vm627 = vcmp.ge.f32.partialorder %v518, %v122
      %v628 = vsel %vm626, %v300, inf
      %v629 = vsel %vm627, %v300, inf
      %v630 = vmin.f32 %v624, %v628
      %v631 = vmin.f32 %v625, %v629
      %vm632 = vcmp.ge.f32.partialorder %v555, %v121
      %vm633 = vcmp.ge.f32.partialorder %v559, %v122
      %v634 = vsel %vm632, %v325, inf
      %v635 = vsel %vm633, %v325, inf
      %v636 = vmin.f32 %v630, %v634
      %v637 = vmin.f32 %v631, %v635
      %vm638 = vcmp.ge.f32.partialorder %v557, %v121
      %vm639 = vcmp.ge.f32.partialorder %v561, %v122
      %v640 = vsel %vm638, %v350, inf
      %v641 = vsel %vm639, %v350, inf
      %v642 = vmin.f32 %v636, %v640
      %v643 = vmin.f32 %v637, %v641
      %vm644 = vcmp.ge.f32.partialorder %v598, %v121
      %vm645 = vcmp.ge.f32.partialorder %v602, %v122
      %v646 = vsel %vm644, %v375, inf
      %v647 = vsel %vm645, %v375, inf
      %v648 = vmin.f32 %v642, %v646
      %v649 = vmin.f32 %v643, %v647
      %vm650 = vcmp.ge.f32.partialorder %v600, %v121
      %vm651 = vcmp.ge.f32.partialorder %v604, %v122
      %v652 = vsel %vm650, %v400, inf
      %v653 = vsel %vm651, %v400, inf
      %v654 = vmin.f32 %v648, %v652
      %v655 = vmin.f32 %v649, %v653
      %656 = vst [vmem:[#allocation4] sm:$0xff] %v654
      %657 = vst [vmem:[#allocation4 + $0x8] sm:$0xff] %v655
    $region46: #{forward.1} parent=1 // loop_footer
      %s217 = sadd.s32 1, %s213
    $region47: #{forward.1} parent=1 // loop_footer_branch
      %212 = sbr.rel target = $region43
    $region48: #{forward.1} parent=1 // loop_exit
      _
    %v658 = vld [vmem:[#allocation4] sm:$0xff]
    %v659 = vld [vmem:[#allocation4 + $0x8] sm:$0xff]
    %v660 = vld [vmem:[%s3] sm:$0x1]
    %v662 = vlaneseq
    %v663 = vshrl.u32 %v662, 7
    %v664 = vsub.s32 0, %v663
    %v665 = vrot.slane %v660, %v664
    %v667 = vadd.f32 %v658, %v665
    %v668 = vadd.f32 %v659, %v665
    %v669 = vmax.f32 %v667, 0.0
    %v670 = vmax.f32 %v668, 0.0
    %v671 = vld [vmem:[#allocation11] sm:$0xff]
    %v672 = vld [vmem:[#allocation11 + $0x8] sm:$0xff]
    %v673 = vld [vmem:[#allocation11 + $0x10] sm:$0xff]
    %v674 = vld [vmem:[#allocation11 + $0x18] sm:$0xff]
    %v675 = vld [vmem:[#allocation11 + $0x20] sm:$0xff]
    %v676 = vld [vmem:[#allocation11 + $0x28] sm:$0xff]
    %v677 = vld [vmem:[#allocation11 + $0x30] sm:$0xff]
    %v678 = vld [vmem:[#allocation11 + $0x38] sm:$0xff]
    %v679 = vld [vmem:[#allocation11 + $0x40] sm:$0xff]
    %v680 = vld [vmem:[#allocation11 + $0x48] sm:$0xff]
    %v681 = vld [vmem:[#allocation11 + $0x50] sm:$0xff]
    %v682 = vld [vmem:[#allocation11 + $0x58] sm:$0xff]
    %v683 = vld [vmem:[#allocation11 + $0x60] sm:$0xff]
    %v684 = vld [vmem:[#allocation11 + $0x68] sm:$0xff]
    %v685 = vld [vmem:[#allocation11 + $0x70] sm:$0xff]
    %v686 = vld [vmem:[#allocation11 + $0x78] sm:$0xff]
    %687 = vmatprep.subr.mxu0 0.0
    %688 = vmatpush1.msra.mxu0 %v671
    %689 = vmatprep.subr.mxu0 0.0
    %690 = vmatpush1.msra.mxu0 %v672
    %691 = vmatprep.subr.mxu0 0.0
    %692 = vmatpush1.msra.mxu0 %v673
    %693 = vmatprep.subr.mxu0 0.0
    %694 = vmatpush1.msra.mxu0 %v674
    %695 = vmatprep.subr.mxu0 0.0
    %696 = vmatpush1.msra.mxu0 %v675
    %697 = vmatprep.subr.mxu0 0.0
    %698 = vmatpush1.msra.mxu0 %v676
    %699 = vmatprep.subr.mxu0 0.0
    %700 = vmatpush1.msra.mxu0 %v677
    %701 = vmatprep.subr.mxu0 0.0
    %702 = vmatpush1.msra.mxu0 %v678
    %703 = vmatprep.subr.mxu0 0.0
    %704 = vmatpush1.msra.mxu0 %v679
    %705 = vmatprep.subr.mxu0 0.0
    %706 = vmatpush1.msra.mxu0 %v680
    %707 = vmatprep.subr.mxu0 0.0
    %708 = vmatpush1.msra.mxu0 %v681
    %709 = vmatprep.subr.mxu0 0.0
    %710 = vmatpush1.msra.mxu0 %v682
    %711 = vmatprep.subr.mxu0 0.0
    %712 = vmatpush1.msra.mxu0 %v683
    %713 = vmatprep.subr.mxu0 0.0
    %714 = vmatpush1.msra.mxu0 %v684
    %715 = vmatprep.subr.mxu0 0.0
    %716 = vmatpush1.msra.mxu0 %v685
    %717 = vmatprep.subr.mxu0 0.0
    %718 = vmatpush1.msra.mxu0 %v686
    %719 = vmatprep.subr.mxu0 0.0
    %720 = vmatpush1.msra.mxu0 0.0
    %721 = vmatprep.subr.mxu0 0.0
    %722 = vmatpush1.msra.mxu0 0.0
    %723 = vmatprep.subr.mxu0 0.0
    %724 = vmatpush1.msra.mxu0 0.0
    %725 = vmatprep.subr.mxu0 0.0
    %726 = vmatpush1.msra.mxu0 0.0
    %727 = vmatprep.subr.mxu0 0.0
    %728 = vmatpush1.msra.mxu0 0.0
    %729 = vmatprep.subr.mxu0 0.0
    %730 = vmatpush1.msra.mxu0 0.0
    %731 = vmatprep.subr.mxu0 0.0
    %732 = vmatpush1.msra.mxu0 0.0
    %733 = vmatprep.subr.mxu0 0.0
    %734 = vmatpush1.msra.mxu0 0.0
    %735 = vmatprep.subr.mxu0 0.0
    %736 = vmatpush1.msra.mxu0 0.0
    %737 = vmatprep.subr.mxu0 0.0
    %738 = vmatpush1.msra.mxu0 0.0
    %739 = vmatprep.subr.mxu0 0.0
    %740 = vmatpush1.msra.mxu0 0.0
    %741 = vmatprep.subr.mxu0 0.0
    %742 = vmatpush1.msra.mxu0 0.0
    %743 = vmatprep.subr.mxu0 0.0
    %744 = vmatpush1.msra.mxu0 0.0
    %745 = vmatprep.subr.mxu0 0.0
    %746 = vmatpush1.msra.mxu0 0.0
    %747 = vmatprep.subr.mxu0 0.0
    %748 = vmatpush1.msra.mxu0 0.0
    %749 = vmatprep.subr.mxu0 0.0
    %750 = vmatpush1.msra.mxu0 0.0
    %751 = vmatprep.mubr.f32.mxu0 0.0
    %752 = vmatmul.mubr.f32.gmra.mrb[0].mxu0 %v669
    %v753 = vpop.f32.mrb[0].mxu0
    %v754 = vadd.f32 0.0, %v753
    %v755 = vpop.f32.mrb[0].mxu0
    %756 = vmatprep.mubr.f32.mxu0 0.0
    %757 = vmatmul.mubr.f32.gmra.mrb[0].mxu0 %v670
    %v758 = vpop.f32.mrb[0].mxu0
    %v759 = vadd.f32 0.0, %v758
    %v760 = vpop.f32.mrb[0].mxu0
    %761 = vdwg.mxu0
    %762 = vst [vmem:[#allocation3] sm:$0xff] %v754
    %763 = vst [vmem:[#allocation3 + $0x8] sm:$0xff] %v759
    %764 = vst [vmem:[#allocation4] sm:$0xff] inf
    %765 = vst [vmem:[#allocation4 + $0x8] sm:$0xff] inf
    loop: start=0, step=1, limit=2
    $region49: #{forward.1} parent=1 // loop_pre_header
      _
    $region50: #{forward.1} parent=1 // loop_header
      %s767 = sphi 0, %s771
      %p768 = scmp.ge.s32.totalorder %s767, 2
    $region51: #{forward.1} parent=1 // loop_header_branch
      %770 = sbr.rel (%p768) target = $region55
    $region52: #{forward.1} parent=1 // loop_body
      %s772 = smul.u32 %s767, 8
      %v773 = vld [vmem:[#allocation3] sm:$0xff]
      %v774 = vld [vmem:[#allocation3 + $0x8] sm:$0xff]
      %s775 = scalar_lea.vmem [#allocation3], %s772
      %v776 = vld [vmem:[%s775] sm:$0xff]
      %v777 = vlaneseq
      %v778 = vshrl.u32 %v777, 7
      %v779 = vsub.s32 0, %v778
      %v780 = vrot.slane %v776, %v779
      %vm781 = vcmp.le.f32.partialorder %v773, %v780
      %vm782 = vcmp.le.f32.partialorder %v774, %v780
      %v783 = vsel %vm781, 1, 0
      %v784 = vsel %vm782, 1, 0
      %v785 = vcvt.s32.f32 %v783
      %v786 = vcvt.s32.f32 %v784
      %v787 = vpack.c.bf16 %v786, %v785
      %v788 = vstv %s772
      %vm789 = vcmp.eq.s32.totalorder %v84, %v788
      %vm790 = vcmp.eq.s32.totalorder %v85, %v788
      %vm791 = vmpackc.low %vm789, %vm789
      %vm792 = vmpackc.low %vm790, %vm790
      %v793 = vsel %vm791, 65537, 0
      %v794 = vsel %vm792, 65537, 0
      %v795 = vunpack.c.l.b16 %v793
      %v796 = vunpack.c.l.b16 %v794
      %v797 = vpack.c.b16 %v796, %v795
      %vm798 = vcmp.ne.s16.totalorder %v797, 0
      %v799 = vsel %vm798, 1140868096, %v787
      %800 = vst [vmem:[#allocation5] sm:$0xff] %v799
      %v801 = vlaneseq
      %v802 = vshrl.u32 %v801, 7
      %v803 = vsub.s32 1, %v802
      %v804 = vrot.slane %v776, %v803
      %vm805 = vcmp.le.f32.partialorder %v773, %v804
      %vm806 = vcmp.le.f32.partialorder %v774, %v804
      %v807 = vsel %vm805, 1, 0
      %v808 = vsel %vm806, 1, 0
      %v809 = vcvt.s32.f32 %v807
      %v810 = vcvt.s32.f32 %v808
      %v811 = vpack.c.bf16 %v810, %v809
      %s812 = sadd.s32 %s772, 1
      %v813 = vstv %s812
      %vm814 = vcmp.eq.s32.totalorder %v84, %v813
      %vm815 = vcmp.eq.s32.totalorder %v85, %v813
      %vm816 = vmpackc.low %vm814, %vm814
      %vm817 = vmpackc.low %vm815, %vm815
      %v818 = vsel %vm816, 65537, 0
      %v819 = vsel %vm817, 65537, 0
      %v820 = vunpack.c.l.b16 %v818
      %v821 = vunpack.c.l.b16 %v819
      %v822 = vpack.c.b16 %v821, %v820
      %vm823 = vcmp.ne.s16.totalorder %v822, 0
      %v824 = vsel %vm823, 1140868096, %v811
      %825 = vst [vmem:[#allocation5 + $0x8] sm:$0xff] %v824
      %v826 = vlaneseq
      %v827 = vshrl.u32 %v826, 7
      %v828 = vsub.s32 2, %v827
      %v829 = vrot.slane %v776, %v828
      %vm830 = vcmp.le.f32.partialorder %v773, %v829
      %vm831 = vcmp.le.f32.partialorder %v774, %v829
      %v832 = vsel %vm830, 1, 0
      %v833 = vsel %vm831, 1, 0
      %v834 = vcvt.s32.f32 %v832
      %v835 = vcvt.s32.f32 %v833
      %v836 = vpack.c.bf16 %v835, %v834
      %s837 = sadd.s32 %s772, 2
      %v838 = vstv %s837
      %vm839 = vcmp.eq.s32.totalorder %v84, %v838
      %vm840 = vcmp.eq.s32.totalorder %v85, %v838
      %vm841 = vmpackc.low %vm839, %vm839
      %vm842 = vmpackc.low %vm840, %vm840
      %v843 = vsel %vm841, 65537, 0
      %v844 = vsel %vm842, 65537, 0
      %v845 = vunpack.c.l.b16 %v843
      %v846 = vunpack.c.l.b16 %v844
      %v847 = vpack.c.b16 %v846, %v845
      %vm848 = vcmp.ne.s16.totalorder %v847, 0
      %v849 = vsel %vm848, 1140868096, %v836
      %850 = vst [vmem:[#allocation5 + $0x10] sm:$0xff] %v849
      %v851 = vlaneseq
      %v852 = vshrl.u32 %v851, 7
      %v853 = vsub.s32 3, %v852
      %v854 = vrot.slane %v776, %v853
      %vm855 = vcmp.le.f32.partialorder %v773, %v854
      %vm856 = vcmp.le.f32.partialorder %v774, %v854
      %v857 = vsel %vm855, 1, 0
      %v858 = vsel %vm856, 1, 0
      %v859 = vcvt.s32.f32 %v857
      %v860 = vcvt.s32.f32 %v858
      %v861 = vpack.c.bf16 %v860, %v859
      %s862 = sadd.s32 %s772, 3
      %v863 = vstv %s862
      %vm864 = vcmp.eq.s32.totalorder %v84, %v863
      %vm865 = vcmp.eq.s32.totalorder %v85, %v863
      %vm866 = vmpackc.low %vm864, %vm864
      %vm867 = vmpackc.low %vm865, %vm865
      %v868 = vsel %vm866, 65537, 0
      %v869 = vsel %vm867, 65537, 0
      %v870 = vunpack.c.l.b16 %v868
      %v871 = vunpack.c.l.b16 %v869
      %v872 = vpack.c.b16 %v871, %v870
      %vm873 = vcmp.ne.s16.totalorder %v872, 0
      %v874 = vsel %vm873, 1140868096, %v861
      %875 = vst [vmem:[#allocation5 + $0x18] sm:$0xff] %v874
      %v876 = vlaneseq
      %v877 = vshrl.u32 %v876, 7
      %v878 = vsub.s32 4, %v877
      %v879 = vrot.slane %v776, %v878
      %vm880 = vcmp.le.f32.partialorder %v773, %v879
      %vm881 = vcmp.le.f32.partialorder %v774, %v879
      %v882 = vsel %vm880, 1, 0
      %v883 = vsel %vm881, 1, 0
      %v884 = vcvt.s32.f32 %v882
      %v885 = vcvt.s32.f32 %v883
      %v886 = vpack.c.bf16 %v885, %v884
      %s887 = sadd.s32 %s772, 4
      %v888 = vstv %s887
      %vm889 = vcmp.eq.s32.totalorder %v84, %v888
      %vm890 = vcmp.eq.s32.totalorder %v85, %v888
      %vm891 = vmpackc.low %vm889, %vm889
      %vm892 = vmpackc.low %vm890, %vm890
      %v893 = vsel %vm891, 65537, 0
      %v894 = vsel %vm892, 65537, 0
      %v895 = vunpack.c.l.b16 %v893
      %v896 = vunpack.c.l.b16 %v894
      %v897 = vpack.c.b16 %v896, %v895
      %vm898 = vcmp.ne.s16.totalorder %v897, 0
      %v899 = vsel %vm898, 1140868096, %v886
      %900 = vst [vmem:[#allocation5 + $0x20] sm:$0xff] %v899
      %v901 = vlaneseq
      %v902 = vshrl.u32 %v901, 7
      %v903 = vsub.s32 5, %v902
      %v904 = vrot.slane %v776, %v903
      %vm905 = vcmp.le.f32.partialorder %v773, %v904
      %vm906 = vcmp.le.f32.partialorder %v774, %v904
      %v907 = vsel %vm905, 1, 0
      %v908 = vsel %vm906, 1, 0
      %v909 = vcvt.s32.f32 %v907
      %v910 = vcvt.s32.f32 %v908
      %v911 = vpack.c.bf16 %v910, %v909
      %s912 = sadd.s32 %s772, 5
      %v913 = vstv %s912
      %vm914 = vcmp.eq.s32.totalorder %v84, %v913
      %vm915 = vcmp.eq.s32.totalorder %v85, %v913
      %vm916 = vmpackc.low %vm914, %vm914
      %vm917 = vmpackc.low %vm915, %vm915
      %v918 = vsel %vm916, 65537, 0
      %v919 = vsel %vm917, 65537, 0
      %v920 = vunpack.c.l.b16 %v918
      %v921 = vunpack.c.l.b16 %v919
      %v922 = vpack.c.b16 %v921, %v920
      %vm923 = vcmp.ne.s16.totalorder %v922, 0
      %v924 = vsel %vm923, 1140868096, %v911
      %925 = vst [vmem:[#allocation5 + $0x28] sm:$0xff] %v924
      %v926 = vlaneseq
      %v927 = vshrl.u32 %v926, 7
      %v928 = vsub.s32 6, %v927
      %v929 = vrot.slane %v776, %v928
      %vm930 = vcmp.le.f32.partialorder %v773, %v929
      %vm931 = vcmp.le.f32.partialorder %v774, %v929
      %v932 = vsel %vm930, 1, 0
      %v933 = vsel %vm931, 1, 0
      %v934 = vcvt.s32.f32 %v932
      %v935 = vcvt.s32.f32 %v933
      %v936 = vpack.c.bf16 %v935, %v934
      %s937 = sadd.s32 %s772, 6
      %v938 = vstv %s937
      %vm939 = vcmp.eq.s32.totalorder %v84, %v938
      %vm940 = vcmp.eq.s32.totalorder %v85, %v938
      %vm941 = vmpackc.low %vm939, %vm939
      %vm942 = vmpackc.low %vm940, %vm940
      %v943 = vsel %vm941, 65537, 0
      %v944 = vsel %vm942, 65537, 0
      %v945 = vunpack.c.l.b16 %v943
      %v946 = vunpack.c.l.b16 %v944
      %v947 = vpack.c.b16 %v946, %v945
      %vm948 = vcmp.ne.s16.totalorder %v947, 0
      %v949 = vsel %vm948, 1140868096, %v936
      %950 = vst [vmem:[#allocation5 + $0x30] sm:$0xff] %v949
      %v951 = vlaneseq
      %v952 = vshrl.u32 %v951, 7
      %v953 = vsub.s32 7, %v952
      %v954 = vrot.slane %v776, %v953
      %vm955 = vcmp.le.f32.partialorder %v773, %v954
      %vm956 = vcmp.le.f32.partialorder %v774, %v954
      %v957 = vsel %vm955, 1, 0
      %v958 = vsel %vm956, 1, 0
      %v959 = vcvt.s32.f32 %v957
      %v960 = vcvt.s32.f32 %v958
      %v961 = vpack.c.bf16 %v960, %v959
      %s962 = sadd.s32 %s772, 7
      %v963 = vstv %s962
      %vm964 = vcmp.eq.s32.totalorder %v84, %v963
      %vm965 = vcmp.eq.s32.totalorder %v85, %v963
      %vm966 = vmpackc.low %vm964, %vm964
      %vm967 = vmpackc.low %vm965, %vm965
      %v968 = vsel %vm966, 65537, 0
      %v969 = vsel %vm967, 65537, 0
      %v970 = vunpack.c.l.b16 %v968
      %v971 = vunpack.c.l.b16 %v969
      %v972 = vpack.c.b16 %v971, %v970
      %vm973 = vcmp.ne.s16.totalorder %v972, 0
      %v974 = vsel %vm973, 1140868096, %v961
      %975 = vst [vmem:[#allocation5 + $0x38] sm:$0xff] %v974
      %v976 = vld [vmem:[#allocation2] sm:$0xff]
      %v977 = vld [vmem:[#allocation5] sm:$0xff]
      %v978 = vld [vmem:[#allocation5 + $0x8] sm:$0xff]
      %v979 = vld [vmem:[#allocation5 + $0x10] sm:$0xff]
      %v980 = vld [vmem:[#allocation5 + $0x18] sm:$0xff]
      %v981 = vld [vmem:[#allocation5 + $0x20] sm:$0xff]
      %v982 = vld [vmem:[#allocation5 + $0x28] sm:$0xff]
      %v983 = vld [vmem:[#allocation5 + $0x30] sm:$0xff]
      %v984 = vld [vmem:[#allocation5 + $0x38] sm:$0xff]
      %v986 = vsel %vm102, %v976, 0
      %988 = vmatprep.subr.bf16.mxu0 %v978
      %989 = vmatpush1.bf16.msra.mxu0 %v977
      %990 = vmatprep.subr.bf16.mxu0 0
      %991 = vmatpush1.bf16.msra.mxu0 0
      %992 = vmatprep.subr.bf16.mxu0 0
      %993 = vmatpush1.bf16.msra.mxu0 0
      %994 = vmatprep.subr.bf16.mxu0 0
      %995 = vmatpush1.bf16.msra.mxu0 0
      %996 = vmatprep.subr.bf16.mxu0 0
      %997 = vmatpush1.bf16.msra.mxu0 0
      %998 = vmatprep.subr.bf16.mxu0 0
      %999 = vmatpush1.bf16.msra.mxu0 0
      %1000 = vmatprep.subr.bf16.mxu0 0
      %1001 = vmatpush1.bf16.msra.mxu0 0
      %1002 = vmatprep.subr.bf16.mxu0 0
      %1003 = vmatpush1.bf16.msra.mxu0 0
      %1004 = vmatprep.subr.bf16.mxu0 0
      %1005 = vmatpush1.bf16.msra.mxu0 0
      %1006 = vmatprep.subr.bf16.mxu0 0
      %1007 = vmatpush1.bf16.msra.mxu0 0
      %1008 = vmatprep.subr.bf16.mxu0 0
      %1009 = vmatpush1.bf16.msra.mxu0 0
      %1010 = vmatprep.subr.bf16.mxu0 0
      %1011 = vmatpush1.bf16.msra.mxu0 0
      %1012 = vmatprep.subr.bf16.mxu0 0
      %1013 = vmatpush1.bf16.msra.mxu0 0
      %1014 = vmatprep.subr.bf16.mxu0 0
      %1015 = vmatpush1.bf16.msra.mxu0 0
      %1016 = vmatprep.subr.bf16.mxu0 0
      %1017 = vmatpush1.bf16.msra.mxu0 0
      %1018 = vmatprep.subr.bf16.mxu0 0
      %1019 = vmatpush1.bf16.msra.mxu0 0
      %1020 = vmatprep.mubr.bf16.mxu0 0
      %1021 = vmatmul.mubr.bf16.gmra.mrb[0].mxu0 %v986
      %v1022 = vpop.f32.mrb[0].mxu0
      %v1023 = vadd.f32 0.0, %v1022
      %v1024 = vpop.f32.mrb[0].mxu0
      %v1025 = vadd.f32 0.0, %v1024
      %v1026 = vpop.f32.mrb[0].mxu0
      %v1027 = vadd.f32 0.0, %v1026
      %v1028 = vpop.f32.mrb[0].mxu0
      %v1029 = vadd.f32 0.0, %v1028
      %1030 = vdwg.mxu0
      %1031 = vmatprep.subr.bf16.mxu0 %v980
      %1032 = vmatpush1.bf16.msra.mxu0 %v979
      %1033 = vmatprep.subr.bf16.mxu0 0
      %1034 = vmatpush1.bf16.msra.mxu0 0
      %1035 = vmatprep.subr.bf16.mxu0 0
      %1036 = vmatpush1.bf16.msra.mxu0 0
      %1037 = vmatprep.subr.bf16.mxu0 0
      %1038 = vmatpush1.bf16.msra.mxu0 0
      %1039 = vmatprep.subr.bf16.mxu0 0
      %1040 = vmatpush1.bf16.msra.mxu0 0
      %1041 = vmatprep.subr.bf16.mxu0 0
      %1042 = vmatpush1.bf16.msra.mxu0 0
      %1043 = vmatprep.subr.bf16.mxu0 0
      %1044 = vmatpush1.bf16.msra.mxu0 0
      %1045 = vmatprep.subr.bf16.mxu0 0
      %1046 = vmatpush1.bf16.msra.mxu0 0
      %1047 = vmatprep.subr.bf16.mxu0 0
      %1048 = vmatpush1.bf16.msra.mxu0 0
      %1049 = vmatprep.subr.bf16.mxu0 0
      %1050 = vmatpush1.bf16.msra.mxu0 0
      %1051 = vmatprep.subr.bf16.mxu0 0
      %1052 = vmatpush1.bf16.msra.mxu0 0
      %1053 = vmatprep.subr.bf16.mxu0 0
      %1054 = vmatpush1.bf16.msra.mxu0 0
      %1055 = vmatprep.subr.bf16.mxu0 0
      %1056 = vmatpush1.bf16.msra.mxu0 0
      %1057 = vmatprep.subr.bf16.mxu0 0
      %1058 = vmatpush1.bf16.msra.mxu0 0
      %1059 = vmatprep.subr.bf16.mxu0 0
      %1060 = vmatpush1.bf16.msra.mxu0 0
      %1061 = vmatprep.subr.bf16.mxu0 0
      %1062 = vmatpush1.bf16.msra.mxu0 0
      %1063 = vmatprep.mubr.bf16.mxu0 0
      %1064 = vmatmul.mubr.bf16.gmra.mrb[0].mxu0 %v986
      %v1065 = vpop.f32.mrb[0].mxu0
      %v1066 = vadd.f32 0.0, %v1065
      %v1067 = vpop.f32.mrb[0].mxu0
      %v1068 = vadd.f32 0.0, %v1067
      %v1069 = vpop.f32.mrb[0].mxu0
      %v1070 = vadd.f32 0.0, %v1069
      %v1071 = vpop.f32.mrb[0].mxu0
      %v1072 = vadd.f32 0.0, %v1071
      %1073 = vdwg.mxu0
      %1074 = vmatprep.subr.bf16.mxu0 %v982
      %1075 = vmatpush1.bf16.msra.mxu0 %v981
      %1076 = vmatprep.subr.bf16.mxu0 0
      %1077 = vmatpush1.bf16.msra.mxu0 0
      %1078 = vmatprep.subr.bf16.mxu0 0
      %1079 = vmatpush1.bf16.msra.mxu0 0
      %1080 = vmatprep.subr.bf16.mxu0 0
      %1081 = vmatpush1.bf16.msra.mxu0 0
      %1082 = vmatprep.subr.bf16.mxu0 0
      %1083 = vmatpush1.bf16.msra.mxu0 0
      %1084 = vmatprep.subr.bf16.mxu0 0
      %1085 = vmatpush1.bf16.msra.mxu0 0
      %1086 = vmatprep.subr.bf16.mxu0 0
      %1087 = vmatpush1.bf16.msra.mxu0 0
      %1088 = vmatprep.subr.bf16.mxu0 0
      %1089 = vmatpush1.bf16.msra.mxu0 0
      %1090 = vmatprep.subr.bf16.mxu0 0
      %1091 = vmatpush1.bf16.msra.mxu0 0
      %1092 = vmatprep.subr.bf16.mxu0 0
      %1093 = vmatpush1.bf16.msra.mxu0 0
      %1094 = vmatprep.subr.bf16.mxu0 0
      %1095 = vmatpush1.bf16.msra.mxu0 0
      %1096 = vmatprep.subr.bf16.mxu0 0
      %1097 = vmatpush1.bf16.msra.mxu0 0
      %1098 = vmatprep.subr.bf16.mxu0 0
      %1099 = vmatpush1.bf16.msra.mxu0 0
      %1100 = vmatprep.subr.bf16.mxu0 0
      %1101 = vmatpush1.bf16.msra.mxu0 0
      %1102 = vmatprep.subr.bf16.mxu0 0
      %1103 = vmatpush1.bf16.msra.mxu0 0
      %1104 = vmatprep.subr.bf16.mxu0 0
      %1105 = vmatpush1.bf16.msra.mxu0 0
      %1106 = vmatprep.mubr.bf16.mxu0 0
      %1107 = vmatmul.mubr.bf16.gmra.mrb[0].mxu0 %v986
      %v1108 = vpop.f32.mrb[0].mxu0
      %v1109 = vadd.f32 0.0, %v1108
      %v1110 = vpop.f32.mrb[0].mxu0
      %v1111 = vadd.f32 0.0, %v1110
      %v1112 = vpop.f32.mrb[0].mxu0
      %v1113 = vadd.f32 0.0, %v1112
      %v1114 = vpop.f32.mrb[0].mxu0
      %v1115 = vadd.f32 0.0, %v1114
      %1116 = vdwg.mxu0
      %1117 = vmatprep.subr.bf16.mxu0 %v984
      %1118 = vmatpush1.bf16.msra.mxu0 %v983
      %1119 = vmatprep.subr.bf16.mxu0 0
      %1120 = vmatpush1.bf16.msra.mxu0 0
      %1121 = vmatprep.subr.bf16.mxu0 0
      %1122 = vmatpush1.bf16.msra.mxu0 0
      %1123 = vmatprep.subr.bf16.mxu0 0
      %1124 = vmatpush1.bf16.msra.mxu0 0
      %1125 = vmatprep.subr.bf16.mxu0 0
      %1126 = vmatpush1.bf16.msra.mxu0 0
      %1127 = vmatprep.subr.bf16.mxu0 0
      %1128 = vmatpush1.bf16.msra.mxu0 0
      %1129 = vmatprep.subr.bf16.mxu0 0
      %1130 = vmatpush1.bf16.msra.mxu0 0
      %1131 = vmatprep.subr.bf16.mxu0 0
      %1132 = vmatpush1.bf16.msra.mxu0 0
      %1133 = vmatprep.subr.bf16.mxu0 0
      %1134 = vmatpush1.bf16.msra.mxu0 0
      %1135 = vmatprep.subr.bf16.mxu0 0
      %1136 = vmatpush1.bf16.msra.mxu0 0
      %1137 = vmatprep.subr.bf16.mxu0 0
      %1138 = vmatpush1.bf16.msra.mxu0 0
      %1139 = vmatprep.subr.bf16.mxu0 0
      %1140 = vmatpush1.bf16.msra.mxu0 0
      %1141 = vmatprep.subr.bf16.mxu0 0
      %1142 = vmatpush1.bf16.msra.mxu0 0
      %1143 = vmatprep.subr.bf16.mxu0 0
      %1144 = vmatpush1.bf16.msra.mxu0 0
      %1145 = vmatprep.subr.bf16.mxu0 0
      %1146 = vmatpush1.bf16.msra.mxu0 0
      %1147 = vmatprep.subr.bf16.mxu0 0
      %1148 = vmatpush1.bf16.msra.mxu0 0
      %1149 = vmatprep.mubr.bf16.mxu0 0
      %1150 = vmatmul.mubr.bf16.gmra.mrb[0].mxu0 %v986
      %v1151 = vpop.f32.mrb[0].mxu0
      %v1152 = vadd.f32 0.0, %v1151
      %v1153 = vpop.f32.mrb[0].mxu0
      %v1154 = vadd.f32 0.0, %v1153
      %v1155 = vpop.f32.mrb[0].mxu0
      %v1156 = vadd.f32 0.0, %v1155
      %v1157 = vpop.f32.mrb[0].mxu0
      %v1158 = vadd.f32 0.0, %v1157
      %1159 = vdwg.mxu0
      %v1160 = vld [vmem:[#allocation4] sm:$0xff]
      %v1161 = vld [vmem:[#allocation4 + $0x8] sm:$0xff]
      %vm1162 = vcmp.ge.f32.partialorder %v1023, %v121
      %vm1163 = vcmp.ge.f32.partialorder %v1027, %v122
      %v1164 = vsel %vm1162, %v780, inf
      %v1165 = vsel %vm1163, %v780, inf
      %v1166 = vmin.f32 %v1160, %v1164
      %v1167 = vmin.f32 %v1161, %v1165
      %vm1168 = vcmp.ge.f32.partialorder %v1025, %v121
      %vm1169 = vcmp.ge.f32.partialorder %v1029, %v122
      %v1170 = vsel %vm1168, %v804, inf
      %v1171 = vsel %vm1169, %v804, inf
      %v1172 = vmin.f32 %v1166, %v1170
      %v1173 = vmin.f32 %v1167, %v1171
      %vm1174 = vcmp.ge.f32.partialorder %v1066, %v121
      %vm1175 = vcmp.ge.f32.partialorder %v1070, %v122
      %v1176 = vsel %vm1174, %v829, inf
      %v1177 = vsel %vm1175, %v829, inf
      %v1178 = vmin.f32 %v1172, %v1176
      %v1179 = vmin.f32 %v1173, %v1177
      %vm1180 = vcmp.ge.f32.partialorder %v1068, %v121
      %vm1181 = vcmp.ge.f32.partialorder %v1072, %v122
      %v1182 = vsel %vm1180, %v854, inf
      %v1183 = vsel %vm1181, %v854, inf
      %v1184 = vmin.f32 %v1178, %v1182
      %v1185 = vmin.f32 %v1179, %v1183
      %vm1186 = vcmp.ge.f32.partialorder %v1109, %v121
      %vm1187 = vcmp.ge.f32.partialorder %v1113, %v122
      %v1188 = vsel %vm1186, %v879, inf
      %v1189 = vsel %vm1187, %v879, inf
      %v1190 = vmin.f32 %v1184, %v1188
      %v1191 = vmin.f32 %v1185, %v1189
      %vm1192 = vcmp.ge.f32.partialorder %v1111, %v121
      %vm1193 = vcmp.ge.f32.partialorder %v1115, %v122
      %v1194 = vsel %vm1192, %v904, inf
      %v1195 = vsel %vm1193, %v904, inf
      %v1196 = vmin.f32 %v1190, %v1194
      %v1197 = vmin.f32 %v1191, %v1195
      %vm1198 = vcmp.ge.f32.partialorder %v1152, %v121
      %vm1199 = vcmp.ge.f32.partialorder %v1156, %v122
      %v1200 = vsel %vm1198, %v929, inf
      %v1201 = vsel %vm1199, %v929, inf
      %v1202 = vmin.f32 %v1196, %v1200
      %v1203 = vmin.f32 %v1197, %v1201
      %vm1204 = vcmp.ge.f32.partialorder %v1154, %v121
      %vm1205 = vcmp.ge.f32.partialorder %v1158, %v122
      %v1206 = vsel %vm1204, %v954, inf
      %v1207 = vsel %vm1205, %v954, inf
      %v1208 = vmin.f32 %v1202, %v1206
      %v1209 = vmin.f32 %v1203, %v1207
      %1210 = vst [vmem:[#allocation4] sm:$0xff] %v1208
      %1211 = vst [vmem:[#allocation4 + $0x8] sm:$0xff] %v1209
    $region53: #{forward.1} parent=1 // loop_footer
      %s771 = sadd.s32 1, %s767
    $region54: #{forward.1} parent=1 // loop_footer_branch
      %766 = sbr.rel target = $region50
    $region55: #{forward.1} parent=1 // loop_exit
      _
    %v1212 = vld [vmem:[#allocation4] sm:$0xff]
    %v1213 = vld [vmem:[#allocation4 + $0x8] sm:$0xff]
    %v1214 = vld [vmem:[%s5] sm:$0x1]
    %v1216 = vlaneseq
    %v1217 = vshrl.u32 %v1216, 7
    %v1218 = vsub.s32 0, %v1217
    %v1219 = vrot.slane %v1214, %v1218
    %v1221 = vadd.f32 %v1212, %v1219
    %v1222 = vadd.f32 %v1213, %v1219
    %vm1223 = vcmp.lt.s32.totalorder %v87, 8
    %v1224 = vsel %vm1223, %v1221, -inf
    %v1225 = vsel %vm1223, %v1222, -inf
    %1226 = vmax.xlane.f32.xlu0 %v1224
    %v1227 = vpop.xlane.xlu0 %1226
    %1228 = vmax.xlane.f32.xlu0 %v1225
    %v1229 = vpop.xlane.xlu0 %1228
    %v1230 = vsub.f32 %v1224, %v1227
    %v1231 = vsub.f32 %v1225, %v1229
    %v1232 = vmul.f32 %v1230, 1.442695
    %v1233 = vpow.pop %v1232
    %v1234 = vmul.f32 %v1231, 1.442695
    %v1235 = vpow.pop %v1234
    %1236 = vadd.xlane.f32.xlu0 %v1233
    %v1237 = vpop.xlane.xlu0 %1236
    %1238 = vadd.xlane.f32.xlu0 %v1235
    %v1239 = vpop.xlane.xlu0 %1238
    %v1240 = vlog2.pop %v1237
    %v1241 = vmul.f32 %v1240, 0.6931472
    %v1242 = vlog2.pop %v1239
    %v1243 = vmul.f32 %v1242, 0.6931472
    %v1244 = vsub.f32 %v1230, %v1241
    %v1245 = vsub.f32 %v1231, %v1243
    %v1246 = vsel %vm1223, %v1244, 0.0
    %v1247 = vsel %vm1223, %v1245, 0.0
    %1248 = vst [vmem:[%s6] sm:$0xff] %v1246
    %1249 = vst [vmem:[%s6 + $0x8] sm:$0xff] %v1247
    // Predicated region
    $region56: #{forward.1} parent=1 // pred_check
      _
    $region57: #{forward.1} parent=1 // pred_check_branch
      %1251 = sbr.rel (0) target = $region59
    $region58: #{forward.1} parent=1 // pred_region
      _
    $region59: #{forward.1} parent=1 // pred_fallthru
      _
    // Predicated region
    $region60: #{forward.1} parent=1 // pred_check
      _
    $region61: #{forward.1} parent=1 // pred_check_branch
      %1253 = sbr.rel (0) target = $region63
    $region62: #{forward.1} parent=1 // pred_region
      _
    $region63: #{forward.1} parent=1 // pred_fallthru
      _
    %1254 = vsyncpa [#allocation7], 1
    %1255 = vsyncpa [#allocation9], 1
    %1256 = vsyncpa [#allocation12], 1

</llo_original>
